<compile_context>
chip_gen: v5e
topology: v5e:2x2
jax: 0.10.0
libtpu: 0.0.40
codegen_flags: <defaults>
</compile_context>

<pallas_src>
import math

import jax
import jax.numpy as jnp
from jax.experimental import pallas as pl
from jax.experimental.pallas import tpu as pltpu

# ----------------------------- small-shape config -----------------------------
B = 2
C = 3
IMG = 32            # edge size (scaled down from 224 for the synthetic run)
P = 16              # patch size (same as the module)
DEPTH = 2           # "layer" argument, scaled down
D = 32              # hidden dim
HEADS = 4
DH = D // HEADS
MLP = 4 * D
NUM_CLASSES = 10
LORA_R = 4
LORA_ALPHA = 8
LORA_SCALE = LORA_ALPHA / LORA_R
N_PATCH = (IMG // P) ** 2
SEQ = N_PATCH + 1       # + cls token (=5)
SEQ_PAD = 8             # pad to one full sublane tile per image
ROWS_PAD = B * SEQ_PAD  # 16
PATCH_DIM = C * P * P
ATTN_SCALE = 1.0 / math.sqrt(DH)
LN_EPS = 1e-6
NEG_BIG = -1e30


# --------------------------- in-kernel math helpers ----------------------------
def _layernorm(x, g, b):
    mu = jnp.mean(x, axis=-1, keepdims=True)
    xc = x - mu
    var = jnp.mean(xc * xc, axis=-1, keepdims=True)
    return xc * jax.lax.rsqrt(var + LN_EPS) * g + b


def _gelu(x):
    # exact erf GELU, matching torch.nn.GELU default
    return 0.5 * x * (1.0 + jax.lax.erf(x * (1.0 / math.sqrt(2.0))))


# ------------------------------ fused ViT kernel -------------------------------
def fused_vit_kernel(
    # constant-over-layers inputs
    xp_ref, init_ref, mask_ref, patch_w_ref,
    # per-layer (stacked, selected by index_map)
    ln1_g_ref, ln1_b_ref, qkv_w_ref, qkv_b_ref,
    proj_w_ref, proj_b_ref, ln2_g_ref, ln2_b_ref,
    fc1_w_ref, fc1_b_ref, fc2_w_ref, fc2_b_ref,
    # final LN + head
    lnf_g_ref, lnf_b_ref, head_w_ref, head_b_ref,
    # output + scratch
    out_ref, tok_sc,
):
    layer = pl.program_id(0)

    # ---- layer 0: patch embedding + cls/pos (init the resident token slab) ----
    @pl.when(layer == 0)
    def _init():
        # xp has zero rows for the cls slot and the SEQ->SEQ_PAD padding, so this
        # matmul directly yields the (B*SEQ_PAD, D) slab; init_ref carries
        # cls/pos/bias (zeros on pad rows).
        emb = jnp.dot(xp_ref[...], patch_w_ref[...],
                      preferred_element_type=jnp.float32)
        tok_sc[...] = emb + init_ref[...]

    # --------- transformer block for this grid step (one layer) ---------------
    tok = tok_sc[...]                                     # (ROWS_PAD, D) f32, VMEM

    # LN1 fused into the qkv matmul (LoRA already folded into qkv_w)
    t1 = _layernorm(tok, ln1_g_ref[0], ln1_b_ref[0])
    qkv = jnp.dot(t1.astype(jnp.bfloat16), qkv_w_ref[0],
                  preferred_element_type=jnp.float32) + qkv_b_ref[0]   # (ROWS_PAD, 3D)
    qkv_bf = qkv.astype(jnp.bfloat16)                     # single cast, lane-sliced below

    proj_w = proj_w_ref[0]                                # (D, D) bf16
    proj_b = proj_b_ref[0]                                # (1, D) f32
    mask = mask_ref[...]                                  # (ROWS_PAD, ROWS_PAD) additive f32

    # attention, batches collapsed: one (ROWS_PAD, ROWS_PAD) score dot per head;
    # cross-batch / pad-key entries are masked before softmax.  The head's slice
    # of the output projection is folded into the loop (no per-head concat).
    # TODO(synk): on v6e/v7x, pack all heads into one lane-wide dot via a
    # block-diagonal (D, HEADS*ROWS_PAD) K^T RHS to cut 12 tiny dots to ~3.
    attn = jnp.zeros((ROWS_PAD, D), jnp.float32)
    for h in range(HEADS):
        qc = qkv_bf[:, h * DH:(h + 1) * DH]               # (ROWS_PAD, DH) bf16
        kc = qkv_bf[:, D + h * DH:D + (h + 1) * DH]
        vc = qkv_bf[:, 2 * D + h * DH:2 * D + (h + 1) * DH]
        s = jax.lax.dot_general(qc, kc, (((1,), (1,)), ((), ())),
                                preferred_element_type=jnp.float32)    # (ROWS_PAD, ROWS_PAD)
        s = s * ATTN_SCALE + mask
        m = jnp.max(s, axis=-1, keepdims=True)
        p = jnp.exp(s - m)
        l = jnp.sum(p, axis=-1, keepdims=True)
        p = p * pl.reciprocal(l, approx=True)             # EUP slot, not VALU divide
        ho = jnp.dot(p.astype(jnp.bfloat16), vc,
                     preferred_element_type=jnp.float32)               # (ROWS_PAD, DH)
        attn = attn + jnp.dot(ho.astype(jnp.bfloat16),
                              proj_w[h * DH:(h + 1) * DH, :],
                              preferred_element_type=jnp.float32)      # (ROWS_PAD, D)

    # single full-slab (unmasked) store for the attention residual
    tok_sc[...] = tok + attn + proj_b

    # LN2 fused into fc1; MLP (fc1 + GELU + fc2) + residual on the full slab
    tok = tok_sc[...]
    t2 = _layernorm(tok, ln2_g_ref[0], ln2_b_ref[0])
    h1 = jnp.dot(t2.astype(jnp.bfloat16), fc1_w_ref[0],
                 preferred_element_type=jnp.float32) + fc1_b_ref[0]
    h1 = _gelu(h1)
    h2 = jnp.dot(h1.astype(jnp.bfloat16), fc2_w_ref[0],
                 preferred_element_type=jnp.float32) + fc2_b_ref[0]
    tok_sc[...] = tok + h2

    # ---- last layer: final LN on the cls rows ONLY, fused classifier head -----
    @pl.when(layer == pl.num_programs(0) - 1)
    def _head():
        tok_f = tok_sc[...]
        # cls token sits at sublane 0 of each per-batch (SEQ_PAD, D) tile
        cls = jnp.concatenate(
            [tok_f[b * SEQ_PAD:b * SEQ_PAD + 1, :] for b in range(B)], axis=0)  # (B, D)
        t = _layernorm(cls, lnf_g_ref[...], lnf_b_ref[...])
        out_ref[...] = (
            jnp.dot(t.astype(jnp.bfloat16), head_w_ref[...],
                    preferred_element_type=jnp.float32) + head_b_ref[...])


# ------------------------------- parameter init --------------------------------
def init_params(key):
    ks = jax.random.split(key, 9)

    def nrm(k, shape, std=0.02):
        return jax.random.normal(k, shape, jnp.float32) * std

    return {
        # Conv2d(C, D, 16, stride=16) folded to a (C*P*P, D) matmul weight
        "patch_w": nrm(ks[0], (PATCH_DIM, D)),
        "patch_b": jnp.zeros((1, D), jnp.float32),
        "cls": nrm(ks[1], (1, 1, D)),
        "pos": nrm(ks[2], (1, SEQ, D)),
        "ln_g": jnp.ones((1, D), jnp.float32),
        "ln_b": jnp.zeros((1, D), jnp.float32),
        "head_w": nrm(ks[3], (D, NUM_CLASSES)),
        "head_b": jnp.zeros((1, NUM_CLASSES), jnp.float32),
        # per-layer weights, stacked along a leading DEPTH axis
        "ln1_g": jnp.ones((DEPTH, 1, D), jnp.float32),
        "ln1_b": jnp.zeros((DEPTH, 1, D), jnp.float32),
        "qkv_w": nrm(ks[4], (DEPTH, D, 3 * D)),
        "qkv_b": jnp.zeros((DEPTH, 1, 3 * D), jnp.float32),
        # LoRA: A ~ N(0, 0.02), B = 0 (standard PEFT init)
        "qkv_la": nrm(ks[5], (DEPTH, D, LORA_R)),
        "qkv_lb": jnp.zeros((DEPTH, LORA_R, 3 * D), jnp.float32),
        "proj_w": nrm(ks[6], (DEPTH, D, D)),
        "proj_b": jnp.zeros((DEPTH, 1, D), jnp.float32),
        "ln2_g": jnp.ones((DEPTH, 1, D), jnp.float32),
        "ln2_b": jnp.zeros((DEPTH, 1, D), jnp.float32),
        "fc1_w": nrm(ks[7], (DEPTH, D, MLP)),
        "fc1_b": jnp.zeros((DEPTH, 1, MLP), jnp.float32),
        "fc2_w": nrm(ks[8], (DEPTH, MLP, D)),
        "fc2_b": jnp.zeros((DEPTH, 1, D), jnp.float32),
    }


# ----------------------------------- forward -----------------------------------
def foundationmodel_forward(params, x):
    """x: (B, C, IMG, IMG) float32 NCHW.  Returns (B, NUM_CLASSES) logits."""
    bn = x.shape[0]
    assert bn == B

    # --- patch extraction glue (Conv2d k=16,s=16 as a matmul input) ---
    # TODO(synk): at real 224x224 scale, feed patches via a BlockSpec index_map /
    # gather DMA instead of materializing the relayout in HBM.
    xp = x.reshape(bn, C, IMG // P, P, IMG // P, P)
    xp = xp.transpose(0, 2, 4, 1, 3, 5).reshape(bn, N_PATCH, PATCH_DIM)
    # per image: row 0 = zero "patch" for the cls slot, rows 1..N_PATCH = patches,
    # rows SEQ..SEQ_PAD-1 = zero padding (tile-aligned slab)
    xp_pad = jnp.zeros((bn, SEQ_PAD, PATCH_DIM), jnp.float32)
    xp_pad = xp_pad.at[:, 1:1 + N_PATCH, :].set(xp)
    xp_full = xp_pad.reshape(ROWS_PAD, PATCH_DIM).astype(jnp.bfloat16)

    # additive token-init term: row 0 = cls + pos[0]; rows 1..SEQ-1 = pos + patch_b;
    # pad rows = 0 (isolated by the attention mask, never read by the head)
    row0 = params["cls"][0] + params["pos"][0, 0:1]             # (1, D)
    rest = params["pos"][0, 1:] + params["patch_b"]             # (N_PATCH, D)
    per_img = jnp.concatenate(
        [row0, rest, jnp.zeros((SEQ_PAD - SEQ, D), jnp.float32)], axis=0)  # (SEQ_PAD, D)
    tok_init = jnp.broadcast_to(per_img[None], (bn, SEQ_PAD, D)).reshape(ROWS_PAD, D)

    # additive attention mask: valid iff same batch AND key column is a real token
    ids = jnp.arange(ROWS_PAD)
    same_batch = (ids[:, None] // SEQ_PAD) == (ids[None, :] // SEQ_PAD)
    key_valid = (ids % SEQ_PAD) < SEQ
    attn_mask = jnp.where(same_batch & key_valid[None, :], 0.0, NEG_BIG
                          ).astype(jnp.float32)                 # (ROWS_PAD, ROWS_PAD)

    # fold LoRA into the fused qkv weight (valid for forward/inference only)
    qkv_w_eff = params["qkv_w"] + LORA_SCALE * jnp.einsum(
        "ldr,lrn->ldn", params["qkv_la"], params["qkv_lb"])

    bf16 = lambda a: a.astype(jnp.bfloat16)

    def full_spec(shape):
        return pl.BlockSpec(shape, lambda l: (0,) * len(shape))

    def layer_spec(shape):          # shape = (DEPTH, r, c)
        return pl.BlockSpec((1,) + tuple(shape[1:]), lambda l: (l, 0, 0))

    args = (
        xp_full,                                   # (ROWS_PAD, PATCH_DIM) bf16
        tok_init,                                  # (ROWS_PAD, D) f32
        attn_mask,                                 # (ROWS_PAD, ROWS_PAD) f32
        bf16(params["patch_w"]),                   # (PATCH_DIM, D) bf16
        params["ln1_g"], params["ln1_b"],
        bf16(qkv_w_eff), params["qkv_b"],
        bf16(params["proj_w"]), params["proj_b"],
        params["ln2_g"], params["ln2_b"],
        bf16(params["fc1_w"]), params["fc1_b"],
        bf16(params["fc2_w"]), params["fc2_b"],
        params["ln_g"], params["ln_b"],
        bf16(params["head_w"]), params["head_b"],
    )
    in_specs = [
        full_spec(xp_full.shape),
        full_spec(tok_init.shape),
        full_spec(attn_mask.shape),
        full_spec((PATCH_DIM, D)),
        layer_spec((DEPTH, 1, D)), layer_spec((DEPTH, 1, D)),
        layer_spec((DEPTH, D, 3 * D)), layer_spec((DEPTH, 1, 3 * D)),
        layer_spec((DEPTH, D, D)), layer_spec((DEPTH, 1, D)),
        layer_spec((DEPTH, 1, D)), layer_spec((DEPTH, 1, D)),
        layer_spec((DEPTH, D, MLP)), layer_spec((DEPTH, 1, MLP)),
        layer_spec((DEPTH, MLP, D)), layer_spec((DEPTH, 1, D)),
        full_spec((1, D)), full_spec((1, D)),
        full_spec((D, NUM_CLASSES)), full_spec((1, NUM_CLASSES)),
    ]

    grid_spec = pltpu.PrefetchScalarGridSpec(
        num_scalar_prefetch=0,
        grid=(DEPTH,),
        in_specs=in_specs,
        out_specs=pl.BlockSpec((bn, NUM_CLASSES), lambda l: (0, 0)),
        scratch_shapes=[pltpu.VMEM((ROWS_PAD, D), jnp.float32)],  # resident token slab
    )

    # TODO(synk): on v7x (2 TCs), add a leading "parallel" batch/row-tile grid
    # axis (per-batch (SEQ_PAD, D) slab) when scaled to real ViT dims, and set
    # vmem_limit_bytes explicitly for the 64 MiB VMEM budget; the layer axis
    # must stay "arbitrary" because the token scratch is carried across it.
    return pl.pallas_call(
        fused_vit_kernel,
        out_shape=jax.ShapeDtypeStruct((bn, NUM_CLASSES), jnp.float32),
        grid_spec=grid_spec,
        compiler_params=pltpu.CompilerParams(
            dimension_semantics=("arbitrary",)),
    )(*args)


# ------------------------------------ main --------------------------------------
if __name__ == "__main__":
    key = jax.random.PRNGKey(0)
    kx, kp = jax.random.split(key)
    x = jax.random.normal(kx, (B, C, IMG, IMG), jnp.float32)
    params = init_params(kp)

    fwd = jax.jit(foundationmodel_forward)
    logits = jax.block_until_ready(fwd(params, x))
    assert logits.shape == (B, NUM_CLASSES)
    assert bool(jnp.all(jnp.isfinite(logits)))
    print("KERNEL_OK")
</pallas_src>

<mosaic_0001>
module attributes {stable_mosaic.version = 11 : i64} {
  func.func @fused_vit_kernel(%arg0: i32, %arg1: memref<16x768xbf16, #tpu.memory_space<vmem>>, %arg2: memref<16x32xf32, #tpu.memory_space<vmem>>, %arg3: memref<16x16xf32, #tpu.memory_space<vmem>>, %arg4: memref<768x32xbf16, #tpu.memory_space<vmem>>, %arg5: memref<1x1x32xf32, #tpu.memory_space<vmem>>, %arg6: memref<1x1x32xf32, #tpu.memory_space<vmem>>, %arg7: memref<1x32x96xbf16, #tpu.memory_space<vmem>>, %arg8: memref<1x1x96xf32, #tpu.memory_space<vmem>>, %arg9: memref<1x32x32xbf16, #tpu.memory_space<vmem>>, %arg10: memref<1x1x32xf32, #tpu.memory_space<vmem>>, %arg11: memref<1x1x32xf32, #tpu.memory_space<vmem>>, %arg12: memref<1x1x32xf32, #tpu.memory_space<vmem>>, %arg13: memref<1x32x128xbf16, #tpu.memory_space<vmem>>, %arg14: memref<1x1x128xf32, #tpu.memory_space<vmem>>, %arg15: memref<1x128x32xbf16, #tpu.memory_space<vmem>>, %arg16: memref<1x1x32xf32, #tpu.memory_space<vmem>>, %arg17: memref<1x32xf32, #tpu.memory_space<vmem>>, %arg18: memref<1x32xf32, #tpu.memory_space<vmem>>, %arg19: memref<32x10xbf16, #tpu.memory_space<vmem>>, %arg20: memref<1x10xf32, #tpu.memory_space<vmem>>, %arg21: memref<2x10xf32, #tpu.memory_space<vmem>>, %arg22: memref<16x32xf32, #tpu.memory_space<vmem>>) attributes {dimension_semantics = [#tpu.dimension_semantics<arbitrary>], iteration_bounds = array<i64: 2>, scalar_prefetch = 0 : i64, scratch_operands = 1 : i64, tpu.core_type = #tpu.core_type<tc>, window_params = [{pipeline_mode = #tpu.pipeline_mode<synchronous>, transform_indices = @transform_0, window_bounds = array<i64: 16, 768>}, {pipeline_mode = #tpu.pipeline_mode<synchronous>, transform_indices = @transform_1, window_bounds = array<i64: 16, 32>}, {pipeline_mode = #tpu.pipeline_mode<synchronous>, transform_indices = @transform_2, window_bounds = array<i64: 16, 16>}, {pipeline_mode = #tpu.pipeline_mode<synchronous>, transform_indices = @transform_3, window_bounds = array<i64: 768, 32>}, {transform_indices = @transform_4, window_bounds = array<i64: 1, 1, 32>}, {transform_indices = @transform_5, window_bounds = array<i64: 1, 1, 32>}, {transform_indices = @transform_6, window_bounds = array<i64: 1, 32, 96>}, {transform_indices = @transform_7, window_bounds = array<i64: 1, 1, 96>}, {transform_indices = @transform_8, window_bounds = array<i64: 1, 32, 32>}, {transform_indices = @transform_9, window_bounds = array<i64: 1, 1, 32>}, {transform_indices = @transform_10, window_bounds = array<i64: 1, 1, 32>}, {transform_indices = @transform_11, window_bounds = array<i64: 1, 1, 32>}, {transform_indices = @transform_12, window_bounds = array<i64: 1, 32, 128>}, {transform_indices = @transform_13, window_bounds = array<i64: 1, 1, 128>}, {transform_indices = @transform_14, window_bounds = array<i64: 1, 128, 32>}, {transform_indices = @transform_15, window_bounds = array<i64: 1, 1, 32>}, {pipeline_mode = #tpu.pipeline_mode<synchronous>, transform_indices = @transform_16, window_bounds = array<i64: 1, 32>}, {pipeline_mode = #tpu.pipeline_mode<synchronous>, transform_indices = @transform_17, window_bounds = array<i64: 1, 32>}, {pipeline_mode = #tpu.pipeline_mode<synchronous>, transform_indices = @transform_18, window_bounds = array<i64: 32, 10>}, {pipeline_mode = #tpu.pipeline_mode<synchronous>, transform_indices = @transform_19, window_bounds = array<i64: 1, 10>}, {pipeline_mode = #tpu.pipeline_mode<synchronous>, transform_indices = @transform_20, window_bounds = array<i64: 2, 10>}]} {
    %c0_i32 = arith.constant 0 : i32
    %0 = arith.cmpi eq, %arg0, %c0_i32 : i32
    %1 = arith.extui %0 : i1 to i32
    %c0_i32_0 = arith.constant 0 : i32
    %2 = arith.cmpi ne, %1, %c0_i32_0 : i32
    scf.if %2 {
      %c0_87 = arith.constant 0 : index
      %c0_88 = arith.constant 0 : index
      %193 = vector.load %arg1[%c0_87, %c0_88] : memref<16x768xbf16, #tpu.memory_space<vmem>>, vector<16x768xbf16>
      %c0_89 = arith.constant 0 : index
      %c0_90 = arith.constant 0 : index
      %194 = vector.load %arg4[%c0_89, %c0_90] : memref<768x32xbf16, #tpu.memory_space<vmem>>, vector<768x32xbf16>
      %cst_91 = arith.constant dense<0.000000e+00> : vector<16x32xf32>
      %195 = tpu.matmul %193, %194, %cst_91 {dimension_numbers = #tpu.dot_dimension_numbers<[1], [0], [0], [1], [0, 0, 1, 1], [], []>} : vector<16x768xbf16>, vector<768x32xbf16>, vector<16x32xf32> -> vector<16x32xf32>
      %c0_92 = arith.constant 0 : index
      %c0_93 = arith.constant 0 : index
      %196 = vector.load %arg2[%c0_92, %c0_93] : memref<16x32xf32, #tpu.memory_space<vmem>>, vector<16x32xf32>
      %197 = arith.addf %195, %196 : vector<16x32xf32>
      %c0_94 = arith.constant 0 : index
      %c0_95 = arith.constant 0 : index
      %198 = vector.load %arg22[%c0_94, %c0_95] : memref<16x32xf32, #tpu.memory_space<vmem>>, vector<16x32xf32>
      tpu.vector_store %arg22[%c0_94, %c0_95], %197 {strides = array<i32>} : memref<16x32xf32, #tpu.memory_space<vmem>>, vector<16x32xf32>,
    } else {
    }
    %c0 = arith.constant 0 : index
    %c0_1 = arith.constant 0 : index
    %3 = vector.load %arg22[%c0, %c0_1] : memref<16x32xf32, #tpu.memory_space<vmem>>, vector<16x32xf32>
    %c0_2 = arith.constant 0 : index
    %c0_3 = arith.constant 0 : index
    %c0_4 = arith.constant 0 : index
    %4 = vector.load %arg5[%c0_2, %c0_3, %c0_4] : memref<1x1x32xf32, #tpu.memory_space<vmem>>, vector<1x1x32xf32>
    %5 = vector.shape_cast %4 : vector<1x1x32xf32> to vector<1x32xf32>
    %c0_5 = arith.constant 0 : index
    %c0_6 = arith.constant 0 : index
    %c0_7 = arith.constant 0 : index
    %6 = vector.load %arg6[%c0_5, %c0_6, %c0_7] : memref<1x1x32xf32, #tpu.memory_space<vmem>>, vector<1x1x32xf32>
    %7 = vector.shape_cast %6 : vector<1x1x32xf32> to vector<1x32xf32>
    %cst = arith.constant dense<0.000000e+00> : vector<16xf32>
    %8 = vector.multi_reduction <add>, %3, %cst [1] : vector<16x32xf32> to vector<16xf32>
    %9 = vector.shape_cast %8 : vector<16xf32> to vector<16x1xf32>
    %cst_8 = arith.constant 3.200000e+01 : f32
    %10 = vector.broadcast %cst_8 : f32 to vector<16x1xf32>
    %11 = arith.divf %9, %10 : vector<16x1xf32>
    %12 = vector.broadcast %11 : vector<16x1xf32> to vector<16x32xf32>
    %13 = arith.subf %3, %12 : vector<16x32xf32>
    %14 = arith.mulf %13, %13 : vector<16x32xf32>
    %cst_9 = arith.constant dense<0.000000e+00> : vector<16xf32>
    %15 = vector.multi_reduction <add>, %14, %cst_9 [1] : vector<16x32xf32> to vector<16xf32>
    %16 = vector.shape_cast %15 : vector<16xf32> to vector<16x1xf32>
    %cst_10 = arith.constant 3.200000e+01 : f32
    %17 = vector.broadcast %cst_10 : f32 to vector<16x1xf32>
    %18 = arith.divf %16, %17 : vector<16x1xf32>
    %cst_11 = arith.constant 9.99999997E-7 : f32
    %19 = vector.broadcast %cst_11 : f32 to vector<16x1xf32>
    %20 = arith.addf %18, %19 : vector<16x1xf32>
    %21 = math.rsqrt %20 : vector<16x1xf32>
    %22 = vector.broadcast %21 : vector<16x1xf32> to vector<16x32xf32>
    %23 = arith.mulf %13, %22 : vector<16x32xf32>
    %24 = vector.broadcast %5 : vector<1x32xf32> to vector<16x32xf32>
    %25 = arith.mulf %23, %24 : vector<16x32xf32>
    %26 = vector.broadcast %7 : vector<1x32xf32> to vector<16x32xf32>
    %27 = arith.addf %25, %26 : vector<16x32xf32>
    %28 = arith.truncf %27 : vector<16x32xf32> to vector<16x32xbf16>
    %c0_12 = arith.constant 0 : index
    %c0_13 = arith.constant 0 : index
    %c0_14 = arith.constant 0 : index
    %29 = vector.load %arg7[%c0_12, %c0_13, %c0_14] : memref<1x32x96xbf16, #tpu.memory_space<vmem>>, vector<1x32x96xbf16>
    %30 = vector.shape_cast %29 : vector<1x32x96xbf16> to vector<32x96xbf16>
    %cst_15 = arith.constant dense<0.000000e+00> : vector<16x96xf32>
    %31 = tpu.matmul %28, %30, %cst_15 {dimension_numbers = #tpu.dot_dimension_numbers<[1], [0], [0], [1], [0, 0, 1, 1], [], []>} : vector<16x32xbf16>, vector<32x96xbf16>, vector<16x96xf32> -> vector<16x96xf32>
    %c0_16 = arith.constant 0 : index
    %c0_17 = arith.constant 0 : index
    %c0_18 = arith.constant 0 : index
    %32 = vector.load %arg8[%c0_16, %c0_17, %c0_18] : memref<1x1x96xf32, #tpu.memory_space<vmem>>, vector<1x1x96xf32>
    %33 = vector.shape_cast %32 : vector<1x1x96xf32> to vector<1x96xf32>
    %34 = vector.broadcast %33 : vector<1x96xf32> to vector<16x96xf32>
    %35 = arith.addf %31, %34 : vector<16x96xf32>
    %36 = arith.truncf %35 : vector<16x96xf32> to vector<16x96xbf16>
    %c0_19 = arith.constant 0 : index
    %c0_20 = arith.constant 0 : index
    %c0_21 = arith.constant 0 : index
    %37 = vector.load %arg9[%c0_19, %c0_20, %c0_21] : memref<1x32x32xbf16, #tpu.memory_space<vmem>>, vector<1x32x32xbf16>
    %38 = vector.shape_cast %37 : vector<1x32x32xbf16> to vector<32x32xbf16>
    %c0_22 = arith.constant 0 : index
    %c0_23 = arith.constant 0 : index
    %c0_24 = arith.constant 0 : index
    %39 = vector.load %arg10[%c0_22, %c0_23, %c0_24] : memref<1x1x32xf32, #tpu.memory_space<vmem>>, vector<1x1x32xf32>
    %40 = vector.shape_cast %39 : vector<1x1x32xf32> to vector<1x32xf32>
    %c0_25 = arith.constant 0 : index
    %c0_26 = arith.constant 0 : index
    %41 = vector.load %arg3[%c0_25, %c0_26] : memref<16x16xf32, #tpu.memory_space<vmem>>, vector<16x16xf32>
    %cst_27 = arith.constant 0.000000e+00 : f32
    %42 = vector.broadcast %cst_27 : f32 to vector<16x32xf32>
    %43 = vector.extract_strided_slice %36 {offsets = [0, 0], sizes = [16, 8], strides = [1, 1]} : vector<16x96xbf16> to vector<16x8xbf16>
    %44 = vector.extract_strided_slice %36 {offsets = [0, 32], sizes = [16, 8], strides = [1, 1]} : vector<16x96xbf16> to vector<16x8xbf16>
    %45 = vector.extract_strided_slice %36 {offsets = [0, 64], sizes = [16, 8], strides = [1, 1]} : vector<16x96xbf16> to vector<16x8xbf16>
    %cst_28 = arith.constant dense<0.000000e+00> : vector<16x16xf32>
    %46 = tpu.matmul %43, %44, %cst_28 {dimension_numbers = #tpu.dot_dimension_numbers<[1], [1], [0], [0], [0, 0, 1, 0], [], []>} : vector<16x8xbf16>, vector<16x8xbf16>, vector<16x16xf32> -> vector<16x16xf32>
    %cst_29 = arith.constant 0.353553385 : f32
    %47 = vector.broadcast %cst_29 : f32 to vector<16x16xf32>
    %48 = arith.mulf %46, %47 : vector<16x16xf32>
    %49 = arith.addf %48, %41 : vector<16x16xf32>
    %cst_30 = arith.constant dense<0xFF800000> : vector<16xf32>
    %50 = vector.multi_reduction <maximumf>, %49, %cst_30 [1] : vector<16x16xf32> to vector<16xf32>
    %51 = vector.shape_cast %50 : vector<16xf32> to vector<16x1xf32>
    %52 = vector.broadcast %51 : vector<16x1xf32> to vector<16x16xf32>
    %53 = arith.subf %49, %52 : vector<16x16xf32>
    %54 = math.exp %53 : vector<16x16xf32>
    %cst_31 = arith.constant dense<0.000000e+00> : vector<16xf32>
    %55 = vector.multi_reduction <add>, %54, %cst_31 [1] : vector<16x16xf32> to vector<16xf32>
    %56 = vector.shape_cast %55 : vector<16xf32> to vector<16x1xf32>
    %57 = tpu.reciprocal %56 {approx = true} : vector<16x1xf32> -> vector<16x1xf32>
    %58 = vector.broadcast %57 : vector<16x1xf32> to vector<16x16xf32>
    %59 = arith.mulf %54, %58 : vector<16x16xf32>
    %60 = arith.truncf %59 : vector<16x16xf32> to vector<16x16xbf16>
    %cst_32 = arith.constant dense<0.000000e+00> : vector<16x8xf32>
    %61 = tpu.matmul %60, %45, %cst_32 {dimension_numbers = #tpu.dot_dimension_numbers<[1], [0], [0], [1], [0, 0, 1, 1], [], []>} : vector<16x16xbf16>, vector<16x8xbf16>, vector<16x8xf32> -> vector<16x8xf32>
    %62 = arith.truncf %61 : vector<16x8xf32> to vector<16x8xbf16>
    %63 = vector.extract_strided_slice %38 {offsets = [0, 0], sizes = [8, 32], strides = [1, 1]} : vector<32x32xbf16> to vector<8x32xbf16>
    %cst_33 = arith.constant dense<0.000000e+00> : vector<16x32xf32>
    %64 = tpu.matmul %62, %63, %cst_33 {dimension_numbers = #tpu.dot_dimension_numbers<[1], [0], [0], [1], [0, 0, 1, 1], [], []>} : vector<16x8xbf16>, vector<8x32xbf16>, vector<16x32xf32> -> vector<16x32xf32>
    %65 = arith.addf %42, %64 : vector<16x32xf32>
    %66 = vector.extract_strided_slice %36 {offsets = [0, 8], sizes = [16, 8], strides = [1, 1]} : vector<16x96xbf16> to vector<16x8xbf16>
    %67 = vector.extract_strided_slice %36 {offsets = [0, 40], sizes = [16, 8], strides = [1, 1]} : vector<16x96xbf16> to vector<16x8xbf16>
    %68 = vector.extract_strided_slice %36 {offsets = [0, 72], sizes = [16, 8], strides = [1, 1]} : vector<16x96xbf16> to vector<16x8xbf16>
    %cst_34 = arith.constant dense<0.000000e+00> : vector<16x16xf32>
    %69 = tpu.matmul %66, %67, %cst_34 {dimension_numbers = #tpu.dot_dimension_numbers<[1], [1], [0], [0], [0, 0, 1, 0], [], []>} : vector<16x8xbf16>, vector<16x8xbf16>, vector<16x16xf32> -> vector<16x16xf32>
    %cst_35 = arith.constant 0.353553385 : f32
    %70 = vector.broadcast %cst_35 : f32 to vector<16x16xf32>
    %71 = arith.mulf %69, %70 : vector<16x16xf32>
    %72 = arith.addf %71, %41 : vector<16x16xf32>
    %cst_36 = arith.constant dense<0xFF800000> : vector<16xf32>
    %73 = vector.multi_reduction <maximumf>, %72, %cst_36 [1] : vector<16x16xf32> to vector<16xf32>
    %74 = vector.shape_cast %73 : vector<16xf32> to vector<16x1xf32>
    %75 = vector.broadcast %74 : vector<16x1xf32> to vector<16x16xf32>
    %76 = arith.subf %72, %75 : vector<16x16xf32>
    %77 = math.exp %76 : vector<16x16xf32>
    %cst_37 = arith.constant dense<0.000000e+00> : vector<16xf32>
    %78 = vector.multi_reduction <add>, %77, %cst_37 [1] : vector<16x16xf32> to vector<16xf32>
    %79 = vector.shape_cast %78 : vector<16xf32> to vector<16x1xf32>
    %80 = tpu.reciprocal %79 {approx = true} : vector<16x1xf32> -> vector<16x1xf32>
    %81 = vector.broadcast %80 : vector<16x1xf32> to vector<16x16xf32>
    %82 = arith.mulf %77, %81 : vector<16x16xf32>
    %83 = arith.truncf %82 : vector<16x16xf32> to vector<16x16xbf16>
    %cst_38 = arith.constant dense<0.000000e+00> : vector<16x8xf32>
    %84 = tpu.matmul %83, %68, %cst_38 {dimension_numbers = #tpu.dot_dimension_numbers<[1], [0], [0], [1], [0, 0, 1, 1], [], []>} : vector<16x16xbf16>, vector<16x8xbf16>, vector<16x8xf32> -> vector<16x8xf32>
    %85 = arith.truncf %84 : vector<16x8xf32> to vector<16x8xbf16>
    %86 = vector.extract_strided_slice %38 {offsets = [8, 0], sizes = [8, 32], strides = [1, 1]} : vector<32x32xbf16> to vector<8x32xbf16>
    %cst_39 = arith.constant dense<0.000000e+00> : vector<16x32xf32>
    %87 = tpu.matmul %85, %86, %cst_39 {dimension_numbers = #tpu.dot_dimension_numbers<[1], [0], [0], [1], [0, 0, 1, 1], [], []>} : vector<16x8xbf16>, vector<8x32xbf16>, vector<16x32xf32> -> vector<16x32xf32>
    %88 = arith.addf %65, %87 : vector<16x32xf32>
    %89 = vector.extract_strided_slice %36 {offsets = [0, 16], sizes = [16, 8], strides = [1, 1]} : vector<16x96xbf16> to vector<16x8xbf16>
    %90 = vector.extract_strided_slice %36 {offsets = [0, 48], sizes = [16, 8], strides = [1, 1]} : vector<16x96xbf16> to vector<16x8xbf16>
    %91 = vector.extract_strided_slice %36 {offsets = [0, 80], sizes = [16, 8], strides = [1, 1]} : vector<16x96xbf16> to vector<16x8xbf16>
    %cst_40 = arith.constant dense<0.000000e+00> : vector<16x16xf32>
    %92 = tpu.matmul %89, %90, %cst_40 {dimension_numbers = #tpu.dot_dimension_numbers<[1], [1], [0], [0], [0, 0, 1, 0], [], []>} : vector<16x8xbf16>, vector<16x8xbf16>, vector<16x16xf32> -> vector<16x16xf32>
    %cst_41 = arith.constant 0.353553385 : f32
    %93 = vector.broadcast %cst_41 : f32 to vector<16x16xf32>
    %94 = arith.mulf %92, %93 : vector<16x16xf32>
    %95 = arith.addf %94, %41 : vector<16x16xf32>
    %cst_42 = arith.constant dense<0xFF800000> : vector<16xf32>
    %96 = vector.multi_reduction <maximumf>, %95, %cst_42 [1] : vector<16x16xf32> to vector<16xf32>
    %97 = vector.shape_cast %96 : vector<16xf32> to vector<16x1xf32>
    %98 = vector.broadcast %97 : vector<16x1xf32> to vector<16x16xf32>
    %99 = arith.subf %95, %98 : vector<16x16xf32>
    %100 = math.exp %99 : vector<16x16xf32>
    %cst_43 = arith.constant dense<0.000000e+00> : vector<16xf32>
    %101 = vector.multi_reduction <add>, %100, %cst_43 [1] : vector<16x16xf32> to vector<16xf32>
    %102 = vector.shape_cast %101 : vector<16xf32> to vector<16x1xf32>
    %103 = tpu.reciprocal %102 {approx = true} : vector<16x1xf32> -> vector<16x1xf32>
    %104 = vector.broadcast %103 : vector<16x1xf32> to vector<16x16xf32>
    %105 = arith.mulf %100, %104 : vector<16x16xf32>
    %106 = arith.truncf %105 : vector<16x16xf32> to vector<16x16xbf16>
    %cst_44 = arith.constant dense<0.000000e+00> : vector<16x8xf32>
    %107 = tpu.matmul %106, %91, %cst_44 {dimension_numbers = #tpu.dot_dimension_numbers<[1], [0], [0], [1], [0, 0, 1, 1], [], []>} : vector<16x16xbf16>, vector<16x8xbf16>, vector<16x8xf32> -> vector<16x8xf32>
    %108 = arith.truncf %107 : vector<16x8xf32> to vector<16x8xbf16>
    %109 = vector.extract_strided_slice %38 {offsets = [16, 0], sizes = [8, 32], strides = [1, 1]} : vector<32x32xbf16> to vector<8x32xbf16>
    %cst_45 = arith.constant dense<0.000000e+00> : vector<16x32xf32>
    %110 = tpu.matmul %108, %109, %cst_45 {dimension_numbers = #tpu.dot_dimension_numbers<[1], [0], [0], [1], [0, 0, 1, 1], [], []>} : vector<16x8xbf16>, vector<8x32xbf16>, vector<16x32xf32> -> vector<16x32xf32>
    %111 = arith.addf %88, %110 : vector<16x32xf32>
    %112 = vector.extract_strided_slice %36 {offsets = [0, 24], sizes = [16, 8], strides = [1, 1]} : vector<16x96xbf16> to vector<16x8xbf16>
    %113 = vector.extract_strided_slice %36 {offsets = [0, 56], sizes = [16, 8], strides = [1, 1]} : vector<16x96xbf16> to vector<16x8xbf16>
    %114 = vector.extract_strided_slice %36 {offsets = [0, 88], sizes = [16, 8], strides = [1, 1]} : vector<16x96xbf16> to vector<16x8xbf16>
    %cst_46 = arith.constant dense<0.000000e+00> : vector<16x16xf32>
    %115 = tpu.matmul %112, %113, %cst_46 {dimension_numbers = #tpu.dot_dimension_numbers<[1], [1], [0], [0], [0, 0, 1, 0], [], []>} : vector<16x8xbf16>, vector<16x8xbf16>, vector<16x16xf32> -> vector<16x16xf32>
    %cst_47 = arith.constant 0.353553385 : f32
    %116 = vector.broadcast %cst_47 : f32 to vector<16x16xf32>
    %117 = arith.mulf %115, %116 : vector<16x16xf32>
    %118 = arith.addf %117, %41 : vector<16x16xf32>
    %cst_48 = arith.constant dense<0xFF800000> : vector<16xf32>
    %119 = vector.multi_reduction <maximumf>, %118, %cst_48 [1] : vector<16x16xf32> to vector<16xf32>
    %120 = vector.shape_cast %119 : vector<16xf32> to vector<16x1xf32>
    %121 = vector.broadcast %120 : vector<16x1xf32> to vector<16x16xf32>
    %122 = arith.subf %118, %121 : vector<16x16xf32>
    %123 = math.exp %122 : vector<16x16xf32>
    %cst_49 = arith.constant dense<0.000000e+00> : vector<16xf32>
    %124 = vector.multi_reduction <add>, %123, %cst_49 [1] : vector<16x16xf32> to vector<16xf32>
    %125 = vector.shape_cast %124 : vector<16xf32> to vector<16x1xf32>
    %126 = tpu.reciprocal %125 {approx = true} : vector<16x1xf32> -> vector<16x1xf32>
    %127 = vector.broadcast %126 : vector<16x1xf32> to vector<16x16xf32>
    %128 = arith.mulf %123, %127 : vector<16x16xf32>
    %129 = arith.truncf %128 : vector<16x16xf32> to vector<16x16xbf16>
    %cst_50 = arith.constant dense<0.000000e+00> : vector<16x8xf32>
    %130 = tpu.matmul %129, %114, %cst_50 {dimension_numbers = #tpu.dot_dimension_numbers<[1], [0], [0], [1], [0, 0, 1, 1], [], []>} : vector<16x16xbf16>, vector<16x8xbf16>, vector<16x8xf32> -> vector<16x8xf32>
    %131 = arith.truncf %130 : vector<16x8xf32> to vector<16x8xbf16>
    %132 = vector.extract_strided_slice %38 {offsets = [24, 0], sizes = [8, 32], strides = [1, 1]} : vector<32x32xbf16> to vector<8x32xbf16>
    %cst_51 = arith.constant dense<0.000000e+00> : vector<16x32xf32>
    %133 = tpu.matmul %131, %132, %cst_51 {dimension_numbers = #tpu.dot_dimension_numbers<[1], [0], [0], [1], [0, 0, 1, 1], [], []>} : vector<16x8xbf16>, vector<8x32xbf16>, vector<16x32xf32> -> vector<16x32xf32>
    %134 = arith.addf %111, %133 : vector<16x32xf32>
    %135 = arith.addf %3, %134 : vector<16x32xf32>
    %136 = vector.broadcast %40 : vector<1x32xf32> to vector<16x32xf32>
    %137 = arith.addf %135, %136 : vector<16x32xf32>
    %c0_52 = arith.constant 0 : index
    %c0_53 = arith.constant 0 : index
    %138 = vector.load %arg22[%c0_52, %c0_53] : memref<16x32xf32, #tpu.memory_space<vmem>>, vector<16x32xf32>
    tpu.vector_store %arg22[%c0_52, %c0_53], %137 {strides = array<i32>} : memref<16x32xf32, #tpu.memory_space<vmem>>, vector<16x32xf32>,
    %c0_54 = arith.constant 0 : index
    %c0_55 = arith.constant 0 : index
    %139 = vector.load %arg22[%c0_54, %c0_55] : memref<16x32xf32, #tpu.memory_space<vmem>>, vector<16x32xf32>
    %c0_56 = arith.constant 0 : index
    %c0_57 = arith.constant 0 : index
    %c0_58 = arith.constant 0 : index
    %140 = vector.load %arg11[%c0_56, %c0_57, %c0_58] : memref<1x1x32xf32, #tpu.memory_space<vmem>>, vector<1x1x32xf32>
    %141 = vector.shape_cast %140 : vector<1x1x32xf32> to vector<1x32xf32>
    %c0_59 = arith.constant 0 : index
    %c0_60 = arith.constant 0 : index
    %c0_61 = arith.constant 0 : index
    %142 = vector.load %arg12[%c0_59, %c0_60, %c0_61] : memref<1x1x32xf32, #tpu.memory_space<vmem>>, vector<1x1x32xf32>
    %143 = vector.shape_cast %142 : vector<1x1x32xf32> to vector<1x32xf32>
    %cst_62 = arith.constant dense<0.000000e+00> : vector<16xf32>
    %144 = vector.multi_reduction <add>, %139, %cst_62 [1] : vector<16x32xf32> to vector<16xf32>
    %145 = vector.shape_cast %144 : vector<16xf32> to vector<16x1xf32>
    %cst_63 = arith.constant 3.200000e+01 : f32
    %146 = vector.broadcast %cst_63 : f32 to vector<16x1xf32>
    %147 = arith.divf %145, %146 : vector<16x1xf32>
    %148 = vector.broadcast %147 : vector<16x1xf32> to vector<16x32xf32>
    %149 = arith.subf %139, %148 : vector<16x32xf32>
    %150 = arith.mulf %149, %149 : vector<16x32xf32>
    %cst_64 = arith.constant dense<0.000000e+00> : vector<16xf32>
    %151 = vector.multi_reduction <add>, %150, %cst_64 [1] : vector<16x32xf32> to vector<16xf32>
    %152 = vector.shape_cast %151 : vector<16xf32> to vector<16x1xf32>
    %cst_65 = arith.constant 3.200000e+01 : f32
    %153 = vector.broadcast %cst_65 : f32 to vector<16x1xf32>
    %154 = arith.divf %152, %153 : vector<16x1xf32>
    %cst_66 = arith.constant 9.99999997E-7 : f32
    %155 = vector.broadcast %cst_66 : f32 to vector<16x1xf32>
    %156 = arith.addf %154, %155 : vector<16x1xf32>
    %157 = math.rsqrt %156 : vector<16x1xf32>
    %158 = vector.broadcast %157 : vector<16x1xf32> to vector<16x32xf32>
    %159 = arith.mulf %149, %158 : vector<16x32xf32>
    %160 = vector.broadcast %141 : vector<1x32xf32> to vector<16x32xf32>
    %161 = arith.mulf %159, %160 : vector<16x32xf32>
    %162 = vector.broadcast %143 : vector<1x32xf32> to vector<16x32xf32>
    %163 = arith.addf %161, %162 : vector<16x32xf32>
    %164 = arith.truncf %163 : vector<16x32xf32> to vector<16x32xbf16>
    %c0_67 = arith.constant 0 : index
    %c0_68 = arith.constant 0 : index
    %c0_69 = arith.constant 0 : index
    %165 = vector.load %arg13[%c0_67, %c0_68, %c0_69] : memref<1x32x128xbf16, #tpu.memory_space<vmem>>, vector<1x32x128xbf16>
    %166 = vector.shape_cast %165 : vector<1x32x128xbf16> to vector<32x128xbf16>
    %cst_70 = arith.constant dense<0.000000e+00> : vector<16x128xf32>
    %167 = tpu.matmul %164, %166, %cst_70 {dimension_numbers = #tpu.dot_dimension_numbers<[1], [0], [0], [1], [0, 0, 1, 1], [], []>} : vector<16x32xbf16>, vector<32x128xbf16>, vector<16x128xf32> -> vector<16x128xf32>
    %c0_71 = arith.constant 0 : index
    %c0_72 = arith.constant 0 : index
    %c0_73 = arith.constant 0 : index
    %168 = vector.load %arg14[%c0_71, %c0_72, %c0_73] : memref<1x1x128xf32, #tpu.memory_space<vmem>>, vector<1x1x128xf32>
    %169 = vector.shape_cast %168 : vector<1x1x128xf32> to vector<1x128xf32>
    %170 = vector.broadcast %169 : vector<1x128xf32> to vector<16x128xf32>
    %171 = arith.addf %167, %170 : vector<16x128xf32>
    %cst_74 = arith.constant 5.000000e-01 : f32
    %172 = vector.broadcast %cst_74 : f32 to vector<16x128xf32>
    %173 = arith.mulf %172, %171 : vector<16x128xf32>
    %cst_75 = arith.constant 0.707106769 : f32
    %174 = vector.broadcast %cst_75 : f32 to vector<16x128xf32>
    %175 = arith.mulf %171, %174 : vector<16x128xf32>
    %176 = math.erf %175 : vector<16x128xf32>
    %cst_76 = arith.constant 1.000000e+00 : f32
    %177 = vector.broadcast %cst_76 : f32 to vector<16x128xf32>
    %178 = arith.addf %177, %176 : vector<16x128xf32>
    %179 = arith.mulf %173, %178 : vector<16x128xf32>
    %180 = arith.truncf %179 : vector<16x128xf32> to vector<16x128xbf16>
    %c0_77 = arith.constant 0 : index
    %c0_78 = arith.constant 0 : index
    %c0_79 = arith.constant 0 : index
    %181 = vector.load %arg15[%c0_77, %c0_78, %c0_79] : memref<1x128x32xbf16, #tpu.memory_space<vmem>>, vector<1x128x32xbf16>
    %182 = vector.shape_cast %181 : vector<1x128x32xbf16> to vector<128x32xbf16>
    %cst_80 = arith.constant dense<0.000000e+00> : vector<16x32xf32>
    %183 = tpu.matmul %180, %182, %cst_80 {dimension_numbers = #tpu.dot_dimension_numbers<[1], [0], [0], [1], [0, 0, 1, 1], [], []>} : vector<16x128xbf16>, vector<128x32xbf16>, vector<16x32xf32> -> vector<16x32xf32>
    %c0_81 = arith.constant 0 : index
    %c0_82 = arith.constant 0 : index
    %c0_83 = arith.constant 0 : index
    %184 = vector.load %arg16[%c0_81, %c0_82, %c0_83] : memref<1x1x32xf32, #tpu.memory_space<vmem>>, vector<1x1x32xf32>
    %185 = vector.shape_cast %184 : vector<1x1x32xf32> to vector<1x32xf32>
    %186 = vector.broadcast %185 : vector<1x32xf32> to vector<16x32xf32>
    %187 = arith.addf %183, %186 : vector<16x32xf32>
    %188 = arith.addf %139, %187 : vector<16x32xf32>
    %c0_84 = arith.constant 0 : index
    %c0_85 = arith.constant 0 : index
    %189 = vector.load %arg22[%c0_84, %c0_85] : memref<16x32xf32, #tpu.memory_space<vmem>>, vector<16x32xf32>
    tpu.vector_store %arg22[%c0_84, %c0_85], %188 {strides = array<i32>} : memref<16x32xf32, #tpu.memory_space<vmem>>, vector<16x32xf32>,
    %c1_i32 = arith.constant 1 : i32
    %190 = arith.cmpi eq, %arg0, %c1_i32 : i32
    %191 = arith.extui %190 : i1 to i32
    %c0_i32_86 = arith.constant 0 : i32
    %192 = arith.cmpi ne, %191, %c0_i32_86 : i32
    scf.if %192 {
      %c0_87 = arith.constant 0 : index
      %c0_88 = arith.constant 0 : index
      %193 = vector.load %arg22[%c0_87, %c0_88] : memref<16x32xf32, #tpu.memory_space<vmem>>, vector<16x32xf32>
      %194 = vector.extract_strided_slice %193 {offsets = [0, 0], sizes = [1, 32], strides = [1, 1]} : vector<16x32xf32> to vector<1x32xf32>
      %195 = vector.extract_strided_slice %193 {offsets = [8, 0], sizes = [1, 32], strides = [1, 1]} : vector<16x32xf32> to vector<1x32xf32>
      %196 = tpu.concatenate %194, %195 in 0 : vector<1x32xf32>, vector<1x32xf32> -> vector<2x32xf32>
      %c0_89 = arith.constant 0 : index
      %c0_90 = arith.constant 0 : index
      %197 = vector.load %arg17[%c0_89, %c0_90] : memref<1x32xf32, #tpu.memory_space<vmem>>, vector<1x32xf32>
      %c0_91 = arith.constant 0 : index
      %c0_92 = arith.constant 0 : index
      %198 = vector.load %arg18[%c0_91, %c0_92] : memref<1x32xf32, #tpu.memory_space<vmem>>, vector<1x32xf32>
      %cst_93 = arith.constant dense<0.000000e+00> : vector<2xf32>
      %199 = vector.multi_reduction <add>, %196, %cst_93 [1] : vector<2x32xf32> to vector<2xf32>
      %200 = vector.shape_cast %199 : vector<2xf32> to vector<2x1xf32>
      %cst_94 = arith.constant 3.200000e+01 : f32
      %201 = vector.broadcast %cst_94 : f32 to vector<2x1xf32>
      %202 = arith.divf %200, %201 : vector<2x1xf32>
      %203 = vector.broadcast %202 : vector<2x1xf32> to vector<2x32xf32>
      %204 = arith.subf %196, %203 : vector<2x32xf32>
      %205 = arith.mulf %204, %204 : vector<2x32xf32>
      %cst_95 = arith.constant dense<0.000000e+00> : vector<2xf32>
      %206 = vector.multi_reduction <add>, %205, %cst_95 [1] : vector<2x32xf32> to vector<2xf32>
      %207 = vector.shape_cast %206 : vector<2xf32> to vector<2x1xf32>
      %cst_96 = arith.constant 3.200000e+01 : f32
      %208 = vector.broadcast %cst_96 : f32 to vector<2x1xf32>
      %209 = arith.divf %207, %208 : vector<2x1xf32>
      %cst_97 = arith.constant 9.99999997E-7 : f32
      %210 = vector.broadcast %cst_97 : f32 to vector<2x1xf32>
      %211 = arith.addf %209, %210 : vector<2x1xf32>
      %212 = math.rsqrt %211 : vector<2x1xf32>
      %213 = vector.broadcast %212 : vector<2x1xf32> to vector<2x32xf32>
      %214 = arith.mulf %204, %213 : vector<2x32xf32>
      %215 = vector.broadcast %197 : vector<1x32xf32> to vector<2x32xf32>
      %216 = arith.mulf %214, %215 : vector<2x32xf32>
      %217 = vector.broadcast %198 : vector<1x32xf32> to vector<2x32xf32>
      %218 = arith.addf %216, %217 : vector<2x32xf32>
      %219 = arith.truncf %218 : vector<2x32xf32> to vector<2x32xbf16>
      %c0_98 = arith.constant 0 : index
      %c0_99 = arith.constant 0 : index
      %220 = vector.load %arg19[%c0_98, %c0_99] : memref<32x10xbf16, #tpu.memory_space<vmem>>, vector<32x10xbf16>
      %cst_100 = arith.constant dense<0.000000e+00> : vector<2x10xf32>
      %221 = tpu.matmul %219, %220, %cst_100 {dimension_numbers = #tpu.dot_dimension_numbers<[1], [0], [0], [1], [0, 0, 1, 1], [], []>} : vector<2x32xbf16>, vector<32x10xbf16>, vector<2x10xf32> -> vector<2x10xf32>
      %c0_101 = arith.constant 0 : index
      %c0_102 = arith.constant 0 : index
      %222 = vector.load %arg20[%c0_101, %c0_102] : memref<1x10xf32, #tpu.memory_space<vmem>>, vector<1x10xf32>
      %223 = vector.broadcast %222 : vector<1x10xf32> to vector<2x10xf32>
      %224 = arith.addf %221, %223 : vector<2x10xf32>
      %c0_103 = arith.constant 0 : index
      %c0_104 = arith.constant 0 : index
      %225 = vector.load %arg21[%c0_103, %c0_104] : memref<2x10xf32, #tpu.memory_space<vmem>>, vector<2x10xf32>
      tpu.vector_store %arg21[%c0_103, %c0_104], %224 {strides = array<i32>} : memref<2x10xf32, #tpu.memory_space<vmem>>, vector<2x10xf32>,
    } else {
    }
    return
  }
  func.func @transform_0(%arg0: i32) -> (i32, i32) {
    %c0_i32 = arith.constant 0 : i32
    %c0_i32_0 = arith.constant 0 : i32
    %c0_i32_1 = arith.constant 0 : i32
    return %c0_i32, %c0_i32_0 : i32, i32
  }
  func.func @transform_1(%arg0: i32) -> (i32, i32) {
    %c0_i32 = arith.constant 0 : i32
    %c0_i32_0 = arith.constant 0 : i32
    %c0_i32_1 = arith.constant 0 : i32
    return %c0_i32, %c0_i32_0 : i32, i32
  }
  func.func @transform_2(%arg0: i32) -> (i32, i32) {
    %c0_i32 = arith.constant 0 : i32
    %c0_i32_0 = arith.constant 0 : i32
    %c0_i32_1 = arith.constant 0 : i32
    return %c0_i32, %c0_i32_0 : i32, i32
  }
  func.func @transform_3(%arg0: i32) -> (i32, i32) {
    %c0_i32 = arith.constant 0 : i32
    %c0_i32_0 = arith.constant 0 : i32
    %c0_i32_1 = arith.constant 0 : i32
    return %c0_i32, %c0_i32_0 : i32, i32
  }
  func.func @transform_4(%arg0: i32) -> (i32, i32, i32) {
    %c0_i32 = arith.constant 0 : i32
    %c0_i32_0 = arith.constant 0 : i32
    %c0_i32_1 = arith.constant 0 : i32
    return %arg0, %c0_i32, %c0_i32_0 : i32, i32, i32
  }
  func.func @transform_5(%arg0: i32) -> (i32, i32, i32) {
    %c0_i32 = arith.constant 0 : i32
    %c0_i32_0 = arith.constant 0 : i32
    %c0_i32_1 = arith.constant 0 : i32
    return %arg0, %c0_i32, %c0_i32_0 : i32, i32, i32
  }
  func.func @transform_6(%arg0: i32) -> (i32, i32, i32) {
    %c0_i32 = arith.constant 0 : i32
    %c0_i32_0 = arith.constant 0 : i32
    %c0_i32_1 = arith.constant 0 : i32
    return %arg0, %c0_i32, %c0_i32_0 : i32, i32, i32
  }
  func.func @transform_7(%arg0: i32) -> (i32, i32, i32) {
    %c0_i32 = arith.constant 0 : i32
    %c0_i32_0 = arith.constant 0 : i32
    %c0_i32_1 = arith.constant 0 : i32
    return %arg0, %c0_i32, %c0_i32_0 : i32, i32, i32
  }
  func.func @transform_8(%arg0: i32) -> (i32, i32, i32) {
    %c0_i32 = arith.constant 0 : i32
    %c0_i32_0 = arith.constant 0 : i32
    %c0_i32_1 = arith.constant 0 : i32
    return %arg0, %c0_i32, %c0_i32_0 : i32, i32, i32
  }
  func.func @transform_9(%arg0: i32) -> (i32, i32, i32) {
    %c0_i32 = arith.constant 0 : i32
    %c0_i32_0 = arith.constant 0 : i32
    %c0_i32_1 = arith.constant 0 : i32
    return %arg0, %c0_i32, %c0_i32_0 : i32, i32, i32
  }
  func.func @transform_10(%arg0: i32) -> (i32, i32, i32) {
    %c0_i32 = arith.constant 0 : i32
    %c0_i32_0 = arith.constant 0 : i32
    %c0_i32_1 = arith.constant 0 : i32
    return %arg0, %c0_i32, %c0_i32_0 : i32, i32, i32
  }
  func.func @transform_11(%arg0: i32) -> (i32, i32, i32) {
    %c0_i32 = arith.constant 0 : i32
    %c0_i32_0 = arith.constant 0 : i32
    %c0_i32_1 = arith.constant 0 : i32
    return %arg0, %c0_i32, %c0_i32_0 : i32, i32, i32
  }
  func.func @transform_12(%arg0: i32) -> (i32, i32, i32) {
    %c0_i32 = arith.constant 0 : i32
    %c0_i32_0 = arith.constant 0 : i32
    %c0_i32_1 = arith.constant 0 : i32
    return %arg0, %c0_i32, %c0_i32_0 : i32, i32, i32
  }
  func.func @transform_13(%arg0: i32) -> (i32, i32, i32) {
    %c0_i32 = arith.constant 0 : i32
    %c0_i32_0 = arith.constant 0 : i32
    %c0_i32_1 = arith.constant 0 : i32
    return %arg0, %c0_i32, %c0_i32_0 : i32, i32, i32
  }
  func.func @transform_14(%arg0: i32) -> (i32, i32, i32) {
    %c0_i32 = arith.constant 0 : i32
    %c0_i32_0 = arith.constant 0 : i32
    %c0_i32_1 = arith.constant 0 : i32
    return %arg0, %c0_i32, %c0_i32_0 : i32, i32, i32
  }
  func.func @transform_15(%arg0: i32) -> (i32, i32, i32) {
    %c0_i32 = arith.constant 0 : i32
    %c0_i32_0 = arith.constant 0 : i32
    %c0_i32_1 = arith.constant 0 : i32
    return %arg0, %c0_i32, %c0_i32_0 : i32, i32, i32
  }
  func.func @transform_16(%arg0: i32) -> (i32, i32) {
    %c0_i32 = arith.constant 0 : i32
    %c0_i32_0 = arith.constant 0 : i32
    %c0_i32_1 = arith.constant 0 : i32
    return %c0_i32, %c0_i32_0 : i32, i32
  }
  func.func @transform_17(%arg0: i32) -> (i32, i32) {
    %c0_i32 = arith.constant 0 : i32
    %c0_i32_0 = arith.constant 0 : i32
    %c0_i32_1 = arith.constant 0 : i32
    return %c0_i32, %c0_i32_0 : i32, i32
  }
  func.func @transform_18(%arg0: i32) -> (i32, i32) {
    %c0_i32 = arith.constant 0 : i32
    %c0_i32_0 = arith.constant 0 : i32
    %c0_i32_1 = arith.constant 0 : i32
    return %c0_i32, %c0_i32_0 : i32, i32
  }
  func.func @transform_19(%arg0: i32) -> (i32, i32) {
    %c0_i32 = arith.constant 0 : i32
    %c0_i32_0 = arith.constant 0 : i32
    %c0_i32_1 = arith.constant 0 : i32
    return %c0_i32, %c0_i32_0 : i32, i32
  }
  func.func @transform_20(%arg0: i32) -> (i32, i32) {
    %c0_i32 = arith.constant 0 : i32
    %c0_i32_0 = arith.constant 0 : i32
    %c0_i32_1 = arith.constant 0 : i32
    return %c0_i32, %c0_i32_0 : i32, i32
  }
}

</mosaic_0001>

<llo_original>
// kernel: foundationmodel_forward.1
$region0: #{foundationmodel_forward.1}
  #allocation0 [shape = 'u32[]', space=smem, size = 0x4, offset = 0x4, fixed_abs, tag = 'smem constant byte address 0x4 - core index']
  #allocation1 [shape = 'u32[72,128]{1,0:T(1,128)}', space=vmem, size = 0x9000, scoped, tag = 'internal scratch']
  #allocation2 [shape = 'f32[16,32]{1,0:T(8,128)}', space=vmem, size = 0x2000, scoped, tag = 'scratch operand']
  %s0 = inlined_call_operand.vmem [shape: bf16[16,768], index: 0, kind: input, shape index: {}]
  %s1 = inlined_call_operand.vmem [shape: f32[16,32], index: 1, kind: input, shape index: {}]
  %s2 = inlined_call_operand.vmem [shape: f32[16,16], index: 2, kind: input, shape index: {}]
  %s3 = inlined_call_operand.vmem [shape: bf16[768,32], index: 3, kind: input, shape index: {}]
  %s4 = inlined_call_operand.vmem [shape: f32[2,1,32], index: 4, kind: input, shape index: {}]
  %s5 = inlined_call_operand.vmem [shape: f32[2,1,32], index: 5, kind: input, shape index: {}]
  %s6 = inlined_call_operand.vmem [shape: bf16[2,32,96], index: 6, kind: input, shape index: {}]
  %s7 = inlined_call_operand.vmem [shape: f32[2,1,96], index: 7, kind: input, shape index: {}]
  %s8 = inlined_call_operand.vmem [shape: bf16[2,32,32], index: 8, kind: input, shape index: {}]
  %s9 = inlined_call_operand.vmem [shape: f32[2,1,32], index: 9, kind: input, shape index: {}]
  %s10 = inlined_call_operand.vmem [shape: f32[2,1,32], index: 10, kind: input, shape index: {}]
  %s11 = inlined_call_operand.vmem [shape: f32[2,1,32], index: 11, kind: input, shape index: {}]
  %s12 = inlined_call_operand.vmem [shape: bf16[2,32,128], index: 12, kind: input, shape index: {}]
  %s13 = inlined_call_operand.vmem [shape: f32[2,1,128], index: 13, kind: input, shape index: {}]
  %s14 = inlined_call_operand.vmem [shape: bf16[2,128,32], index: 14, kind: input, shape index: {}]
  %s15 = inlined_call_operand.vmem [shape: f32[2,1,32], index: 15, kind: input, shape index: {}]
  %s16 = inlined_call_operand.vmem [shape: f32[1,32], index: 16, kind: input, shape index: {}]
  %s17 = inlined_call_operand.vmem [shape: f32[1,32], index: 17, kind: input, shape index: {}]
  %s18 = inlined_call_operand.vmem [shape: bf16[32,10], index: 18, kind: input, shape index: {}]
  %s19 = inlined_call_operand.vmem [shape: f32[1,10], index: 19, kind: input, shape index: {}]
  %s20 = inlined_call_operand.hbm [shape: f32[2,10], index: 20, kind: output, shape index: {}]
  %s21 = sld [smem:[#allocation0]]
  $region121: #{foundationmodel_forward.1} parent=0
    _
  %s23 = ssub.s32 1, %s21
  %s24 = scalar_select 0, %s23, %s21
  $region1: #{foundationmodel_forward.1} parent=0
    #allocation3 [shape = 'u8[1024]{0}', space=vmem, size = 0x400, scoped, tag = 'output window, operand 0, single buffered']
    #allocation4 [shape = 's32[2]{0}', space=sflag, size = 0x8, scoped, tag = 'scoped memory for foundationmodel_forward.1']
    %25 = vsyncpa [#allocation4], 0
    loop: start=0, step=1, limit=4
    $region2: #{foundationmodel_forward.1} parent=1 // loop_pre_header
      _
    $region3: #{foundationmodel_forward.1} parent=1 // loop_header
      %s27 = sphi 0, %s31
      %p28 = scmp.ge.s32.totalorder %s27, 4
      %s35 = sphi 0, %s35
      %s37 = sphi 0, %s35
      %s38 = sphi 0, %s37
      %s52 = sphi 0, %s38
      %s56 = sphi 0, %s56
      %s58 = sphi 0, %s56
      %s59 = sphi 0, %s58
      %s73 = sphi 0, %s59
      %s77 = sphi 0, %s77
      %s79 = sphi 0, %s77
      %s80 = sphi 0, %s79
      %s94 = sphi 0, %s80
      %s98 = sphi 0, %s98
      %s100 = sphi 0, %s98
      %s101 = sphi 0, %s100
      %s115 = sphi 0, %s101
      %s121 = sphi 0, %s123
      %s124 = sphi 0, %s121
      %s125 = sphi 0, %s124
      %s141 = sphi 0, %s125
      %s147 = sphi 0, %s149
      %s150 = sphi 0, %s147
      %s151 = sphi 0, %s150
      %s167 = sphi 0, %s151
      %s173 = sphi 0, %s175
      %s176 = sphi 0, %s173
      %s177 = sphi 0, %s176
      %s193 = sphi 0, %s177
      %s199 = sphi 0, %s201
      %s202 = sphi 0, %s199
      %s203 = sphi 0, %s202
      %s219 = sphi 0, %s203
      %s225 = sphi 0, %s227
      %s228 = sphi 0, %s225
      %s229 = sphi 0, %s228
      %s245 = sphi 0, %s229
      %s251 = sphi 0, %s253
      %s254 = sphi 0, %s251
      %s255 = sphi 0, %s254
      %s271 = sphi 0, %s255
      %s277 = sphi 0, %s279
      %s280 = sphi 0, %s277
      %s281 = sphi 0, %s280
      %s297 = sphi 0, %s281
      %s303 = sphi 0, %s305
      %s306 = sphi 0, %s303
      %s307 = sphi 0, %s306
      %s323 = sphi 0, %s307
      %s329 = sphi 0, %s331
      %s332 = sphi 0, %s329
      %s333 = sphi 0, %s332
      %s349 = sphi 0, %s333
      %s355 = sphi 0, %s357
      %s358 = sphi 0, %s355
      %s359 = sphi 0, %s358
      %s375 = sphi 0, %s359
      %s381 = sphi 0, %s383
      %s384 = sphi 0, %s381
      %s385 = sphi 0, %s384
      %s401 = sphi 0, %s385
      %s407 = sphi 0, %s409
      %s410 = sphi 0, %s407
      %s411 = sphi 0, %s410
      %s427 = sphi 0, %s411
      %s431 = sphi 0, %s431
      %s433 = sphi 0, %s431
      %s434 = sphi 0, %s433
      %s448 = sphi 0, %s434
      %s452 = sphi 0, %s452
      %s454 = sphi 0, %s452
      %s455 = sphi 0, %s454
      %s469 = sphi 0, %s455
      %s473 = sphi 0, %s473
      %s475 = sphi 0, %s473
      %s476 = sphi 0, %s475
      %s490 = sphi 0, %s476
      %s494 = sphi 0, %s494
      %s496 = sphi 0, %s494
      %s497 = sphi 0, %s496
      %s511 = sphi 0, %s497
      %s515 = sphi 0, %s515
      %s517 = sphi 0, %s515
      %s518 = sphi 0, %s517
      %s532 = sphi 0, %s518
    $region4: #{foundationmodel_forward.1} parent=1 // loop_header_branch
      %30 = sbr.rel (%p28) target = $region8
    $region5: #{foundationmodel_forward.1} parent=1 // loop_body
      %s32 = ssub.s32 %s27, 1
      %s33 = ssub.s32 %s27, 2
      %s34 = sadd.s32 %s27, 1
      %s36 = sadd.s32 %s35, 1
      %p39 = scmp.eq.s32.totalorder %s27, 1
      %p40 = scmp.ne.s32.totalorder %s35, %s37
      %p41 = scmp.eq.s32.totalorder %s27, 0
      %p42 = por %p40, %p41
      %p43 = scmp.ne.s32.totalorder %s35, %s37
      %p44 = scmp.eq.s32.totalorder %s32, 1
      %p45 = por %p43, %p44
      %p46 = scmp.ne.s32.totalorder %s37, %s38
      %p47 = scmp.eq.s32.totalorder %s32, 0
      %p48 = por %p46, %p47
      %p49 = scmp.ne.s32.totalorder %s37, %s38
      %p50 = scmp.eq.s32.totalorder %s33, 1
      %p51 = por %p49, %p50
      %p53 = scmp.ne.s32.totalorder %s38, %s52
      %p54 = scmp.eq.s32.totalorder %s33, 0
      %p55 = por %p53, %p54
      %s57 = sadd.s32 %s56, 1
      %p60 = scmp.eq.s32.totalorder %s27, 1
      %p61 = scmp.ne.s32.totalorder %s56, %s58
      %p62 = scmp.eq.s32.totalorder %s27, 0
      %p63 = por %p61, %p62
      %p64 = scmp.ne.s32.totalorder %s56, %s58
      %p65 = scmp.eq.s32.totalorder %s32, 1
      %p66 = por %p64, %p65
      %p67 = scmp.ne.s32.totalorder %s58, %s59
      %p68 = scmp.eq.s32.totalorder %s32, 0
      %p69 = por %p67, %p68
      %p70 = scmp.ne.s32.totalorder %s58, %s59
      %p71 = scmp.eq.s32.totalorder %s33, 1
      %p72 = por %p70, %p71
      %p74 = scmp.ne.s32.totalorder %s59, %s73
      %p75 = scmp.eq.s32.totalorder %s33, 0
      %p76 = por %p74, %p75
      %s78 = sadd.s32 %s77, 1
      %p81 = scmp.eq.s32.totalorder %s27, 1
      %p82 = scmp.ne.s32.totalorder %s77, %s79
      %p83 = scmp.eq.s32.totalorder %s27, 0
      %p84 = por %p82, %p83
      %p85 = scmp.ne.s32.totalorder %s77, %s79
      %p86 = scmp.eq.s32.totalorder %s32, 1
      %p87 = por %p85, %p86
      %p88 = scmp.ne.s32.totalorder %s79, %s80
      %p89 = scmp.eq.s32.totalorder %s32, 0
      %p90 = por %p88, %p89
      %p91 = scmp.ne.s32.totalorder %s79, %s80
      %p92 = scmp.eq.s32.totalorder %s33, 1
      %p93 = por %p91, %p92
      %p95 = scmp.ne.s32.totalorder %s80, %s94
      %p96 = scmp.eq.s32.totalorder %s33, 0
      %p97 = por %p95, %p96
      %s99 = sadd.s32 %s98, 1
      %p102 = scmp.eq.s32.totalorder %s27, 1
      %p103 = scmp.ne.s32.totalorder %s98, %s100
      %p104 = scmp.eq.s32.totalorder %s27, 0
      %p105 = por %p103, %p104
      %p106 = scmp.ne.s32.totalorder %s98, %s100
      %p107 = scmp.eq.s32.totalorder %s32, 1
      %p108 = por %p106, %p107
      %p109 = scmp.ne.s32.totalorder %s100, %s101
      %p110 = scmp.eq.s32.totalorder %s32, 0
      %p111 = por %p109, %p110
      %p112 = scmp.ne.s32.totalorder %s100, %s101
      %p113 = scmp.eq.s32.totalorder %s33, 1
      %p114 = por %p112, %p113
      %p116 = scmp.ne.s32.totalorder %s101, %s115
      %p117 = scmp.eq.s32.totalorder %s33, 0
      %p118 = por %p116, %p117
      %s119 = ssub.s32 %s27, %s34
      %p120 = scmp.eq.s32.totalorder %s119, 0
      %s122 = sadd.s32 %s121, 1
      %s123 = scalar_select %p120, %s121, %s122
      %p126 = pneg %p120
      %p127 = scmp.eq.s32.totalorder %s27, 1
      %p128 = por %p126, %p127
      %p129 = scmp.ne.s32.totalorder %s121, %s124
      %p130 = scmp.eq.s32.totalorder %s27, 0
      %p131 = por %p129, %p130
      %p132 = scmp.ne.s32.totalorder %s121, %s124
      %p133 = scmp.eq.s32.totalorder %s32, 1
      %p134 = por %p132, %p133
      %p135 = scmp.ne.s32.totalorder %s124, %s125
      %p136 = scmp.eq.s32.totalorder %s32, 0
      %p137 = por %p135, %p136
      %p138 = scmp.ne.s32.totalorder %s124, %s125
      %p139 = scmp.eq.s32.totalorder %s33, 1
      %p140 = por %p138, %p139
      %p142 = scmp.ne.s32.totalorder %s125, %s141
      %p143 = scmp.eq.s32.totalorder %s33, 0
      %p144 = por %p142, %p143
      %s145 = ssub.s32 %s27, %s34
      %p146 = scmp.eq.s32.totalorder %s145, 0
      %s148 = sadd.s32 %s147, 1
      %s149 = scalar_select %p146, %s147, %s148
      %p152 = pneg %p146
      %p153 = scmp.eq.s32.totalorder %s27, 1
      %p154 = por %p152, %p153
      %p155 = scmp.ne.s32.totalorder %s147, %s150
      %p156 = scmp.eq.s32.totalorder %s27, 0
      %p157 = por %p155, %p156
      %p158 = scmp.ne.s32.totalorder %s147, %s150
      %p159 = scmp.eq.s32.totalorder %s32, 1
      %p160 = por %p158, %p159
      %p161 = scmp.ne.s32.totalorder %s150, %s151
      %p162 = scmp.eq.s32.totalorder %s32, 0
      %p163 = por %p161, %p162
      %p164 = scmp.ne.s32.totalorder %s150, %s151
      %p165 = scmp.eq.s32.totalorder %s33, 1
      %p166 = por %p164, %p165
      %p168 = scmp.ne.s32.totalorder %s151, %s167
      %p169 = scmp.eq.s32.totalorder %s33, 0
      %p170 = por %p168, %p169
      %s171 = ssub.s32 %s27, %s34
      %p172 = scmp.eq.s32.totalorder %s171, 0
      %s174 = sadd.s32 %s173, 1
      %s175 = scalar_select %p172, %s173, %s174
      %p178 = pneg %p172
      %p179 = scmp.eq.s32.totalorder %s27, 1
      %p180 = por %p178, %p179
      %p181 = scmp.ne.s32.totalorder %s173, %s176
      %p182 = scmp.eq.s32.totalorder %s27, 0
      %p183 = por %p181, %p182
      %p184 = scmp.ne.s32.totalorder %s173, %s176
      %p185 = scmp.eq.s32.totalorder %s32, 1
      %p186 = por %p184, %p185
      %p187 = scmp.ne.s32.totalorder %s176, %s177
      %p188 = scmp.eq.s32.totalorder %s32, 0
      %p189 = por %p187, %p188
      %p190 = scmp.ne.s32.totalorder %s176, %s177
      %p191 = scmp.eq.s32.totalorder %s33, 1
      %p192 = por %p190, %p191
      %p194 = scmp.ne.s32.totalorder %s177, %s193
      %p195 = scmp.eq.s32.totalorder %s33, 0
      %p196 = por %p194, %p195
      %s197 = ssub.s32 %s27, %s34
      %p198 = scmp.eq.s32.totalorder %s197, 0
      %s200 = sadd.s32 %s199, 1
      %s201 = scalar_select %p198, %s199, %s200
      %p204 = pneg %p198
      %p205 = scmp.eq.s32.totalorder %s27, 1
      %p206 = por %p204, %p205
      %p207 = scmp.ne.s32.totalorder %s199, %s202
      %p208 = scmp.eq.s32.totalorder %s27, 0
      %p209 = por %p207, %p208
      %p210 = scmp.ne.s32.totalorder %s199, %s202
      %p211 = scmp.eq.s32.totalorder %s32, 1
      %p212 = por %p210, %p211
      %p213 = scmp.ne.s32.totalorder %s202, %s203
      %p214 = scmp.eq.s32.totalorder %s32, 0
      %p215 = por %p213, %p214
      %p216 = scmp.ne.s32.totalorder %s202, %s203
      %p217 = scmp.eq.s32.totalorder %s33, 1
      %p218 = por %p216, %p217
      %p220 = scmp.ne.s32.totalorder %s203, %s219
      %p221 = scmp.eq.s32.totalorder %s33, 0
      %p222 = por %p220, %p221
      %s223 = ssub.s32 %s27, %s34
      %p224 = scmp.eq.s32.totalorder %s223, 0
      %s226 = sadd.s32 %s225, 1
      %s227 = scalar_select %p224, %s225, %s226
      %p230 = pneg %p224
      %p231 = scmp.eq.s32.totalorder %s27, 1
      %p232 = por %p230, %p231
      %p233 = scmp.ne.s32.totalorder %s225, %s228
      %p234 = scmp.eq.s32.totalorder %s27, 0
      %p235 = por %p233, %p234
      %p236 = scmp.ne.s32.totalorder %s225, %s228
      %p237 = scmp.eq.s32.totalorder %s32, 1
      %p238 = por %p236, %p237
      %p239 = scmp.ne.s32.totalorder %s228, %s229
      %p240 = scmp.eq.s32.totalorder %s32, 0
      %p241 = por %p239, %p240
      %p242 = scmp.ne.s32.totalorder %s228, %s229
      %p243 = scmp.eq.s32.totalorder %s33, 1
      %p244 = por %p242, %p243
      %p246 = scmp.ne.s32.totalorder %s229, %s245
      %p247 = scmp.eq.s32.totalorder %s33, 0
      %p248 = por %p246, %p247
      %s249 = ssub.s32 %s27, %s34
      %p250 = scmp.eq.s32.totalorder %s249, 0
      %s252 = sadd.s32 %s251, 1
      %s253 = scalar_select %p250, %s251, %s252
      %p256 = pneg %p250
      %p257 = scmp.eq.s32.totalorder %s27, 1
      %p258 = por %p256, %p257
      %p259 = scmp.ne.s32.totalorder %s251, %s254
      %p260 = scmp.eq.s32.totalorder %s27, 0
      %p261 = por %p259, %p260
      %p262 = scmp.ne.s32.totalorder %s251, %s254
      %p263 = scmp.eq.s32.totalorder %s32, 1
      %p264 = por %p262, %p263
      %p265 = scmp.ne.s32.totalorder %s254, %s255
      %p266 = scmp.eq.s32.totalorder %s32, 0
      %p267 = por %p265, %p266
      %p268 = scmp.ne.s32.totalorder %s254, %s255
      %p269 = scmp.eq.s32.totalorder %s33, 1
      %p270 = por %p268, %p269
      %p272 = scmp.ne.s32.totalorder %s255, %s271
      %p273 = scmp.eq.s32.totalorder %s33, 0
      %p274 = por %p272, %p273
      %s275 = ssub.s32 %s27, %s34
      %p276 = scmp.eq.s32.totalorder %s275, 0
      %s278 = sadd.s32 %s277, 1
      %s279 = scalar_select %p276, %s277, %s278
      %p282 = pneg %p276
      %p283 = scmp.eq.s32.totalorder %s27, 1
      %p284 = por %p282, %p283
      %p285 = scmp.ne.s32.totalorder %s277, %s280
      %p286 = scmp.eq.s32.totalorder %s27, 0
      %p287 = por %p285, %p286
      %p288 = scmp.ne.s32.totalorder %s277, %s280
      %p289 = scmp.eq.s32.totalorder %s32, 1
      %p290 = por %p288, %p289
      %p291 = scmp.ne.s32.totalorder %s280, %s281
      %p292 = scmp.eq.s32.totalorder %s32, 0
      %p293 = por %p291, %p292
      %p294 = scmp.ne.s32.totalorder %s280, %s281
      %p295 = scmp.eq.s32.totalorder %s33, 1
      %p296 = por %p294, %p295
      %p298 = scmp.ne.s32.totalorder %s281, %s297
      %p299 = scmp.eq.s32.totalorder %s33, 0
      %p300 = por %p298, %p299
      %s301 = ssub.s32 %s27, %s34
      %p302 = scmp.eq.s32.totalorder %s301, 0
      %s304 = sadd.s32 %s303, 1
      %s305 = scalar_select %p302, %s303, %s304
      %p308 = pneg %p302
      %p309 = scmp.eq.s32.totalorder %s27, 1
      %p310 = por %p308, %p309
      %p311 = scmp.ne.s32.totalorder %s303, %s306
      %p312 = scmp.eq.s32.totalorder %s27, 0
      %p313 = por %p311, %p312
      %p314 = scmp.ne.s32.totalorder %s303, %s306
      %p315 = scmp.eq.s32.totalorder %s32, 1
      %p316 = por %p314, %p315
      %p317 = scmp.ne.s32.totalorder %s306, %s307
      %p318 = scmp.eq.s32.totalorder %s32, 0
      %p319 = por %p317, %p318
      %p320 = scmp.ne.s32.totalorder %s306, %s307
      %p321 = scmp.eq.s32.totalorder %s33, 1
      %p322 = por %p320, %p321
      %p324 = scmp.ne.s32.totalorder %s307, %s323
      %p325 = scmp.eq.s32.totalorder %s33, 0
      %p326 = por %p324, %p325
      %s327 = ssub.s32 %s27, %s34
      %p328 = scmp.eq.s32.totalorder %s327, 0
      %s330 = sadd.s32 %s329, 1
      %s331 = scalar_select %p328, %s329, %s330
      %p334 = pneg %p328
      %p335 = scmp.eq.s32.totalorder %s27, 1
      %p336 = por %p334, %p335
      %p337 = scmp.ne.s32.totalorder %s329, %s332
      %p338 = scmp.eq.s32.totalorder %s27, 0
      %p339 = por %p337, %p338
      %p340 = scmp.ne.s32.totalorder %s329, %s332
      %p341 = scmp.eq.s32.totalorder %s32, 1
      %p342 = por %p340, %p341
      %p343 = scmp.ne.s32.totalorder %s332, %s333
      %p344 = scmp.eq.s32.totalorder %s32, 0
      %p345 = por %p343, %p344
      %p346 = scmp.ne.s32.totalorder %s332, %s333
      %p347 = scmp.eq.s32.totalorder %s33, 1
      %p348 = por %p346, %p347
      %p350 = scmp.ne.s32.totalorder %s333, %s349
      %p351 = scmp.eq.s32.totalorder %s33, 0
      %p352 = por %p350, %p351
      %s353 = ssub.s32 %s27, %s34
      %p354 = scmp.eq.s32.totalorder %s353, 0
      %s356 = sadd.s32 %s355, 1
      %s357 = scalar_select %p354, %s355, %s356
      %p360 = pneg %p354
      %p361 = scmp.eq.s32.totalorder %s27, 1
      %p362 = por %p360, %p361
      %p363 = scmp.ne.s32.totalorder %s355, %s358
      %p364 = scmp.eq.s32.totalorder %s27, 0
      %p365 = por %p363, %p364
      %p366 = scmp.ne.s32.totalorder %s355, %s358
      %p367 = scmp.eq.s32.totalorder %s32, 1
      %p368 = por %p366, %p367
      %p369 = scmp.ne.s32.totalorder %s358, %s359
      %p370 = scmp.eq.s32.totalorder %s32, 0
      %p371 = por %p369, %p370
      %p372 = scmp.ne.s32.totalorder %s358, %s359
      %p373 = scmp.eq.s32.totalorder %s33, 1
      %p374 = por %p372, %p373
      %p376 = scmp.ne.s32.totalorder %s359, %s375
      %p377 = scmp.eq.s32.totalorder %s33, 0
      %p378 = por %p376, %p377
      %s379 = ssub.s32 %s27, %s34
      %p380 = scmp.eq.s32.totalorder %s379, 0
      %s382 = sadd.s32 %s381, 1
      %s383 = scalar_select %p380, %s381, %s382
      %p386 = pneg %p380
      %p387 = scmp.eq.s32.totalorder %s27, 1
      %p388 = por %p386, %p387
      %p389 = scmp.ne.s32.totalorder %s381, %s384
      %p390 = scmp.eq.s32.totalorder %s27, 0
      %p391 = por %p389, %p390
      %p392 = scmp.ne.s32.totalorder %s381, %s384
      %p393 = scmp.eq.s32.totalorder %s32, 1
      %p394 = por %p392, %p393
      %p395 = scmp.ne.s32.totalorder %s384, %s385
      %p396 = scmp.eq.s32.totalorder %s32, 0
      %p397 = por %p395, %p396
      %p398 = scmp.ne.s32.totalorder %s384, %s385
      %p399 = scmp.eq.s32.totalorder %s33, 1
      %p400 = por %p398, %p399
      %p402 = scmp.ne.s32.totalorder %s385, %s401
      %p403 = scmp.eq.s32.totalorder %s33, 0
      %p404 = por %p402, %p403
      %s405 = ssub.s32 %s27, %s34
      %p406 = scmp.eq.s32.totalorder %s405, 0
      %s408 = sadd.s32 %s407, 1
      %s409 = scalar_select %p406, %s407, %s408
      %p412 = pneg %p406
      %p413 = scmp.eq.s32.totalorder %s27, 1
      %p414 = por %p412, %p413
      %p415 = scmp.ne.s32.totalorder %s407, %s410
      %p416 = scmp.eq.s32.totalorder %s27, 0
      %p417 = por %p415, %p416
      %p418 = scmp.ne.s32.totalorder %s407, %s410
      %p419 = scmp.eq.s32.totalorder %s32, 1
      %p420 = por %p418, %p419
      %p421 = scmp.ne.s32.totalorder %s410, %s411
      %p422 = scmp.eq.s32.totalorder %s32, 0
      %p423 = por %p421, %p422
      %p424 = scmp.ne.s32.totalorder %s410, %s411
      %p425 = scmp.eq.s32.totalorder %s33, 1
      %p426 = por %p424, %p425
      %p428 = scmp.ne.s32.totalorder %s411, %s427
      %p429 = scmp.eq.s32.totalorder %s33, 0
      %p430 = por %p428, %p429
      %s432 = sadd.s32 %s431, 1
      %p435 = scmp.eq.s32.totalorder %s27, 1
      %p436 = scmp.ne.s32.totalorder %s431, %s433
      %p437 = scmp.eq.s32.totalorder %s27, 0
      %p438 = por %p436, %p437
      %p439 = scmp.ne.s32.totalorder %s431, %s433
      %p440 = scmp.eq.s32.totalorder %s32, 1
      %p441 = por %p439, %p440
      %p442 = scmp.ne.s32.totalorder %s433, %s434
      %p443 = scmp.eq.s32.totalorder %s32, 0
      %p444 = por %p442, %p443
      %p445 = scmp.ne.s32.totalorder %s433, %s434
      %p446 = scmp.eq.s32.totalorder %s33, 1
      %p447 = por %p445, %p446
      %p449 = scmp.ne.s32.totalorder %s434, %s448
      %p450 = scmp.eq.s32.totalorder %s33, 0
      %p451 = por %p449, %p450
      %s453 = sadd.s32 %s452, 1
      %p456 = scmp.eq.s32.totalorder %s27, 1
      %p457 = scmp.ne.s32.totalorder %s452, %s454
      %p458 = scmp.eq.s32.totalorder %s27, 0
      %p459 = por %p457, %p458
      %p460 = scmp.ne.s32.totalorder %s452, %s454
      %p461 = scmp.eq.s32.totalorder %s32, 1
      %p462 = por %p460, %p461
      %p463 = scmp.ne.s32.totalorder %s454, %s455
      %p464 = scmp.eq.s32.totalorder %s32, 0
      %p465 = por %p463, %p464
      %p466 = scmp.ne.s32.totalorder %s454, %s455
      %p467 = scmp.eq.s32.totalorder %s33, 1
      %p468 = por %p466, %p467
      %p470 = scmp.ne.s32.totalorder %s455, %s469
      %p471 = scmp.eq.s32.totalorder %s33, 0
      %p472 = por %p470, %p471
      %s474 = sadd.s32 %s473, 1
      %p477 = scmp.eq.s32.totalorder %s27, 1
      %p478 = scmp.ne.s32.totalorder %s473, %s475
      %p479 = scmp.eq.s32.totalorder %s27, 0
      %p480 = por %p478, %p479
      %p481 = scmp.ne.s32.totalorder %s473, %s475
      %p482 = scmp.eq.s32.totalorder %s32, 1
      %p483 = por %p481, %p482
      %p484 = scmp.ne.s32.totalorder %s475, %s476
      %p485 = scmp.eq.s32.totalorder %s32, 0
      %p486 = por %p484, %p485
      %p487 = scmp.ne.s32.totalorder %s475, %s476
      %p488 = scmp.eq.s32.totalorder %s33, 1
      %p489 = por %p487, %p488
      %p491 = scmp.ne.s32.totalorder %s476, %s490
      %p492 = scmp.eq.s32.totalorder %s33, 0
      %p493 = por %p491, %p492
      %s495 = sadd.s32 %s494, 1
      %p498 = scmp.eq.s32.totalorder %s27, 1
      %p499 = scmp.ne.s32.totalorder %s494, %s496
      %p500 = scmp.eq.s32.totalorder %s27, 0
      %p501 = por %p499, %p500
      %p502 = scmp.ne.s32.totalorder %s494, %s496
      %p503 = scmp.eq.s32.totalorder %s32, 1
      %p504 = por %p502, %p503
      %p505 = scmp.ne.s32.totalorder %s496, %s497
      %p506 = scmp.eq.s32.totalorder %s32, 0
      %p507 = por %p505, %p506
      %p508 = scmp.ne.s32.totalorder %s496, %s497
      %p509 = scmp.eq.s32.totalorder %s33, 1
      %p510 = por %p508, %p509
      %p512 = scmp.ne.s32.totalorder %s497, %s511
      %p513 = scmp.eq.s32.totalorder %s33, 0
      %p514 = por %p512, %p513
      %s516 = sadd.s32 %s515, 1
      %p519 = scmp.eq.s32.totalorder %s27, 1
      %p520 = scmp.ne.s32.totalorder %s515, %s517
      %p521 = scmp.eq.s32.totalorder %s27, 0
      %p522 = por %p520, %p521
      %p523 = scmp.ne.s32.totalorder %s515, %s517
      %p524 = scmp.eq.s32.totalorder %s32, 1
      %p525 = por %p523, %p524
      %p526 = scmp.ne.s32.totalorder %s517, %s518
      %p527 = scmp.eq.s32.totalorder %s32, 0
      %p528 = por %p526, %p527
      %p529 = scmp.ne.s32.totalorder %s517, %s518
      %p530 = scmp.eq.s32.totalorder %s33, 1
      %p531 = por %p529, %p530
      %p533 = scmp.ne.s32.totalorder %s518, %s532
      %p534 = scmp.eq.s32.totalorder %s33, 0
      %p535 = por %p533, %p534
      %p536 = scmp.le.s32.totalorder 1, %s27
      %p537 = scmp.lt.s32.totalorder %s27, 3
      %p538 = pnand %p536, %p537
      %p539 = pneg %p538
      // Predicated region
      $region9: #{foundationmodel_forward.1} parent=5 // pred_check
        _
      $region10: #{foundationmodel_forward.1} parent=5 // pred_check_branch
        %541 = sbr.rel (%p538) target = $region12
      $region11: #{foundationmodel_forward.1} parent=5 // pred_region
        %s542 = ssub.s32 %s27, 1
        // Predicated region
        $region13: #{foundationmodel_forward.1} parent=11 // pred_check
          %p543 = pneg %p48
        $region14: #{foundationmodel_forward.1} parent=11 // pred_check_branch
          %545 = sbr.rel (%p543) target = $region16
        $region15: #{foundationmodel_forward.1} parent=11 // pred_region
          _
        $region16: #{foundationmodel_forward.1} parent=11 // pred_fallthru
          _
        // Predicated region
        $region17: #{foundationmodel_forward.1} parent=11 // pred_check
          %p546 = pneg %p69
        $region18: #{foundationmodel_forward.1} parent=11 // pred_check_branch
          %548 = sbr.rel (%p546) target = $region20
        $region19: #{foundationmodel_forward.1} parent=11 // pred_region
          _
        $region20: #{foundationmodel_forward.1} parent=11 // pred_fallthru
          _
        // Predicated region
        $region21: #{foundationmodel_forward.1} parent=11 // pred_check
          %p549 = pneg %p90
        $region22: #{foundationmodel_forward.1} parent=11 // pred_check_branch
          %551 = sbr.rel (%p549) target = $region24
        $region23: #{foundationmodel_forward.1} parent=11 // pred_region
          _
        $region24: #{foundationmodel_forward.1} parent=11 // pred_fallthru
          _
        // Predicated region
        $region25: #{foundationmodel_forward.1} parent=11 // pred_check
          %p552 = pneg %p111
        $region26: #{foundationmodel_forward.1} parent=11 // pred_check_branch
          %554 = sbr.rel (%p552) target = $region28
        $region27: #{foundationmodel_forward.1} parent=11 // pred_region
          _
        $region28: #{foundationmodel_forward.1} parent=11 // pred_fallthru
          _
        // Predicated region
        $region29: #{foundationmodel_forward.1} parent=11 // pred_check
          %p555 = pneg %p444
        $region30: #{foundationmodel_forward.1} parent=11 // pred_check_branch
          %557 = sbr.rel (%p555) target = $region32
        $region31: #{foundationmodel_forward.1} parent=11 // pred_region
          _
        $region32: #{foundationmodel_forward.1} parent=11 // pred_fallthru
          _
        // Predicated region
        $region33: #{foundationmodel_forward.1} parent=11 // pred_check
          %p558 = pneg %p465
        $region34: #{foundationmodel_forward.1} parent=11 // pred_check_branch
          %560 = sbr.rel (%p558) target = $region36
        $region35: #{foundationmodel_forward.1} parent=11 // pred_region
          _
        $region36: #{foundationmodel_forward.1} parent=11 // pred_fallthru
          _
        // Predicated region
        $region37: #{foundationmodel_forward.1} parent=11 // pred_check
          %p561 = pneg %p486
        $region38: #{foundationmodel_forward.1} parent=11 // pred_check_branch
          %563 = sbr.rel (%p561) target = $region40
        $region39: #{foundationmodel_forward.1} parent=11 // pred_region
          _
        $region40: #{foundationmodel_forward.1} parent=11 // pred_fallthru
          _
        // Predicated region
        $region41: #{foundationmodel_forward.1} parent=11 // pred_check
          %p564 = pneg %p507
        $region42: #{foundationmodel_forward.1} parent=11 // pred_check_branch
          %566 = sbr.rel (%p564) target = $region44
        $region43: #{foundationmodel_forward.1} parent=11 // pred_region
          _
        $region44: #{foundationmodel_forward.1} parent=11 // pred_fallthru
          _
      $region12: #{foundationmodel_forward.1} parent=5 // pred_fallthru
        _
      %p567 = scmp.lt.s32.totalorder %s27, 2
      // Predicated region
      $region45: #{foundationmodel_forward.1} parent=5 // pred_check
        %p568 = pneg %p567
      $region46: #{foundationmodel_forward.1} parent=5 // pred_check_branch
        %570 = sbr.rel (%p568) target = $region48
      $region47: #{foundationmodel_forward.1} parent=5 // pred_region
        // Predicated region
        $region49: #{foundationmodel_forward.1} parent=47 // pred_check
          %p571 = pneg %p131
        $region50: #{foundationmodel_forward.1} parent=47 // pred_check_branch
          %573 = sbr.rel (%p571) target = $region52
        $region51: #{foundationmodel_forward.1} parent=47 // pred_region
          %p574 = scmp.lt.s32.totalorder %s27, 1
          %s575 = scalar_select %p574, %s27, 1
          %s576 = scalar_lea.vmem %s4, %s575
        $region52: #{foundationmodel_forward.1} parent=47 // pred_fallthru
          _
        // Predicated region
        $region53: #{foundationmodel_forward.1} parent=47 // pred_check
          %p577 = pneg %p157
        $region54: #{foundationmodel_forward.1} parent=47 // pred_check_branch
          %579 = sbr.rel (%p577) target = $region56
        $region55: #{foundationmodel_forward.1} parent=47 // pred_region
          %p580 = scmp.lt.s32.totalorder %s27, 1
          %s581 = scalar_select %p580, %s27, 1
          %s582 = scalar_lea.vmem %s5, %s581
        $region56: #{foundationmodel_forward.1} parent=47 // pred_fallthru
          _
        // Predicated region
        $region57: #{foundationmodel_forward.1} parent=47 // pred_check
          %p583 = pneg %p183
        $region58: #{foundationmodel_forward.1} parent=47 // pred_check_branch
          %585 = sbr.rel (%p583) target = $region60
        $region59: #{foundationmodel_forward.1} parent=47 // pred_region
          %p586 = scmp.lt.s32.totalorder %s27, 1
          %s587 = scalar_select %p586, %s27, 1
          %s588 = smul.addr %s587, 4
          %s589 = smul.addr %s588, 4
          %s590 = scalar_lea.vmem %s6, %s589
        $region60: #{foundationmodel_forward.1} parent=47 // pred_fallthru
          _
        // Predicated region
        $region61: #{foundationmodel_forward.1} parent=47 // pred_check
          %p591 = pneg %p209
        $region62: #{foundationmodel_forward.1} parent=47 // pred_check_branch
          %593 = sbr.rel (%p591) target = $region64
        $region63: #{foundationmodel_forward.1} parent=47 // pred_region
          %p594 = scmp.lt.s32.totalorder %s27, 1
          %s595 = scalar_select %p594, %s27, 1
          %s596 = scalar_lea.vmem %s7, %s595
        $region64: #{foundationmodel_forward.1} parent=47 // pred_fallthru
          _
        // Predicated region
        $region65: #{foundationmodel_forward.1} parent=47 // pred_check
          %p597 = pneg %p235
        $region66: #{foundationmodel_forward.1} parent=47 // pred_check_branch
          %599 = sbr.rel (%p597) target = $region68
        $region67: #{foundationmodel_forward.1} parent=47 // pred_region
          %p600 = scmp.lt.s32.totalorder %s27, 1
          %s601 = scalar_select %p600, %s27, 1
          %s602 = smul.addr %s601, 4
          %s603 = smul.addr %s602, 4
          %s604 = scalar_lea.vmem %s8, %s603
        $region68: #{foundationmodel_forward.1} parent=47 // pred_fallthru
          _
        // Predicated region
        $region69: #{foundationmodel_forward.1} parent=47 // pred_check
          %p605 = pneg %p261
        $region70: #{foundationmodel_forward.1} parent=47 // pred_check_branch
          %607 = sbr.rel (%p605) target = $region72
        $region71: #{foundationmodel_forward.1} parent=47 // pred_region
          %p608 = scmp.lt.s32.totalorder %s27, 1
          %s609 = scalar_select %p608, %s27, 1
          %s610 = scalar_lea.vmem %s9, %s609
        $region72: #{foundationmodel_forward.1} parent=47 // pred_fallthru
          _
        // Predicated region
        $region73: #{foundationmodel_forward.1} parent=47 // pred_check
          %p611 = pneg %p287
        $region74: #{foundationmodel_forward.1} parent=47 // pred_check_branch
          %613 = sbr.rel (%p611) target = $region76
        $region75: #{foundationmodel_forward.1} parent=47 // pred_region
          %p614 = scmp.lt.s32.totalorder %s27, 1
          %s615 = scalar_select %p614, %s27, 1
          %s616 = scalar_lea.vmem %s10, %s615
        $region76: #{foundationmodel_forward.1} parent=47 // pred_fallthru
          _
        // Predicated region
        $region77: #{foundationmodel_forward.1} parent=47 // pred_check
          %p617 = pneg %p313
        $region78: #{foundationmodel_forward.1} parent=47 // pred_check_branch
          %619 = sbr.rel (%p617) target = $region80
        $region79: #{foundationmodel_forward.1} parent=47 // pred_region
          %p620 = scmp.lt.s32.totalorder %s27, 1
          %s621 = scalar_select %p620, %s27, 1
          %s622 = scalar_lea.vmem %s11, %s621
        $region80: #{foundationmodel_forward.1} parent=47 // pred_fallthru
          _
        // Predicated region
        $region81: #{foundationmodel_forward.1} parent=47 // pred_check
          %p623 = pneg %p339
        $region82: #{foundationmodel_forward.1} parent=47 // pred_check_branch
          %625 = sbr.rel (%p623) target = $region84
        $region83: #{foundationmodel_forward.1} parent=47 // pred_region
          %p626 = scmp.lt.s32.totalorder %s27, 1
          %s627 = scalar_select %p626, %s27, 1
          %s628 = smul.addr %s627, 4
          %s629 = smul.addr %s628, 4
          %s630 = scalar_lea.vmem %s12, %s629
        $region84: #{foundationmodel_forward.1} parent=47 // pred_fallthru
          _
        // Predicated region
        $region85: #{foundationmodel_forward.1} parent=47 // pred_check
          %p631 = pneg %p365
        $region86: #{foundationmodel_forward.1} parent=47 // pred_check_branch
          %633 = sbr.rel (%p631) target = $region88
        $region87: #{foundationmodel_forward.1} parent=47 // pred_region
          %p634 = scmp.lt.s32.totalorder %s27, 1
          %s635 = scalar_select %p634, %s27, 1
          %s636 = scalar_lea.vmem %s13, %s635
        $region88: #{foundationmodel_forward.1} parent=47 // pred_fallthru
          _
        // Predicated region
        $region89: #{foundationmodel_forward.1} parent=47 // pred_check
          %p637 = pneg %p391
        $region90: #{foundationmodel_forward.1} parent=47 // pred_check_branch
          %639 = sbr.rel (%p637) target = $region92
        $region91: #{foundationmodel_forward.1} parent=47 // pred_region
          %p640 = scmp.lt.s32.totalorder %s27, 1
          %s641 = scalar_select %p640, %s27, 1
          %s642 = smul.addr %s641, 16
          %s643 = smul.addr %s642, 4
          %s644 = scalar_lea.vmem %s14, %s643
        $region92: #{foundationmodel_forward.1} parent=47 // pred_fallthru
          _
        // Predicated region
        $region93: #{foundationmodel_forward.1} parent=47 // pred_check
          %p645 = pneg %p417
        $region94: #{foundationmodel_forward.1} parent=47 // pred_check_branch
          %647 = sbr.rel (%p645) target = $region96
        $region95: #{foundationmodel_forward.1} parent=47 // pred_region
          %p648 = scmp.lt.s32.totalorder %s27, 1
          %s649 = scalar_select %p648, %s27, 1
          %s650 = scalar_lea.vmem %s15, %s649
        $region96: #{foundationmodel_forward.1} parent=47 // pred_fallthru
          _
      $region48: #{foundationmodel_forward.1} parent=5 // pred_fallthru
        _
      %p651 = scmp.le.s32.totalorder 1, %s27
      %p652 = scmp.lt.s32.totalorder %s27, 3
      %p653 = pnand %p651, %p652
      %p654 = pneg %p653
      // Predicated region
      $region97: #{foundationmodel_forward.1} parent=5 // pred_check
        _
      $region98: #{foundationmodel_forward.1} parent=5 // pred_check_branch
        %656 = sbr.rel (%p653) target = $region100
      $region99: #{foundationmodel_forward.1} parent=5 // pred_region
        %s657 = ssub.s32 %s27, 1
        %p658 = pneg %p48
        %p659 = pneg %p45
        %p660 = pneg %p69
        %p661 = pneg %p66
        %p662 = pneg %p90
        %p663 = pneg %p87
        %p664 = pneg %p111
        %p665 = pneg %p108
        %p666 = scmp.lt.s32.totalorder %s32, 1
        %s667 = scalar_select %p666, %s32, 1
        %s668 = scalar_lea.vmem %s4, %s667
        %p669 = pneg %p137
        %p670 = pneg %p134
        %p671 = scmp.lt.s32.totalorder %s32, 1
        %s672 = scalar_select %p671, %s32, 1
        %s673 = scalar_lea.vmem %s5, %s672
        %p674 = pneg %p163
        %p675 = pneg %p160
        %p676 = scmp.lt.s32.totalorder %s32, 1
        %s677 = scalar_select %p676, %s32, 1
        %s678 = smul.addr %s677, 4
        %s679 = smul.addr %s678, 4
        %s680 = scalar_lea.vmem %s6, %s679
        %p681 = pneg %p189
        %p682 = pneg %p186
        %p683 = scmp.lt.s32.totalorder %s32, 1
        %s684 = scalar_select %p683, %s32, 1
        %s685 = scalar_lea.vmem %s7, %s684
        %p686 = pneg %p215
        %p687 = pneg %p212
        %p688 = scmp.lt.s32.totalorder %s32, 1
        %s689 = scalar_select %p688, %s32, 1
        %s690 = smul.addr %s689, 4
        %s691 = smul.addr %s690, 4
        %s692 = scalar_lea.vmem %s8, %s691
        %p693 = pneg %p241
        %p694 = pneg %p238
        %p695 = scmp.lt.s32.totalorder %s32, 1
        %s696 = scalar_select %p695, %s32, 1
        %s697 = scalar_lea.vmem %s9, %s696
        %p698 = pneg %p267
        %p699 = pneg %p264
        %p700 = scmp.lt.s32.totalorder %s32, 1
        %s701 = scalar_select %p700, %s32, 1
        %s702 = scalar_lea.vmem %s10, %s701
        %p703 = pneg %p293
        %p704 = pneg %p290
        %p705 = scmp.lt.s32.totalorder %s32, 1
        %s706 = scalar_select %p705, %s32, 1
        %s707 = scalar_lea.vmem %s11, %s706
        %p708 = pneg %p319
        %p709 = pneg %p316
        %p710 = scmp.lt.s32.totalorder %s32, 1
        %s711 = scalar_select %p710, %s32, 1
        %s712 = smul.addr %s711, 4
        %s713 = smul.addr %s712, 4
        %s714 = scalar_lea.vmem %s12, %s713
        %p715 = pneg %p345
        %p716 = pneg %p342
        %p717 = scmp.lt.s32.totalorder %s32, 1
        %s718 = scalar_select %p717, %s32, 1
        %s719 = scalar_lea.vmem %s13, %s718
        %p720 = pneg %p371
        %p721 = pneg %p368
        %p722 = scmp.lt.s32.totalorder %s32, 1
        %s723 = scalar_select %p722, %s32, 1
        %s724 = smul.addr %s723, 16
        %s725 = smul.addr %s724, 4
        %s726 = scalar_lea.vmem %s14, %s725
        %p727 = pneg %p397
        %p728 = pneg %p394
        %p729 = scmp.lt.s32.totalorder %s32, 1
        %s730 = scalar_select %p729, %s32, 1
        %s731 = scalar_lea.vmem %s15, %s730
        %p732 = pneg %p423
        %p733 = pneg %p420
        %p734 = pneg %p444
        %p735 = pneg %p441
        %p736 = pneg %p465
        %p737 = pneg %p462
        %p738 = pneg %p486
        %p739 = pneg %p483
        %p740 = pneg %p507
        %p741 = pneg %p504
        %p742 = pneg %p528
        %p743 = pneg %p525
        %p744 = scmp.lt.s32.totalorder %s32, 1
        %s745 = scalar_select %p744, %s32, 1
        %s746 = scalar_lea.vmem %s4, %s745
        %p747 = scmp.lt.s32.totalorder %s32, 1
        %s748 = scalar_select %p747, %s32, 1
        %s749 = scalar_lea.vmem %s5, %s748
        %p750 = scmp.lt.s32.totalorder %s32, 1
        %s751 = scalar_select %p750, %s32, 1
        %s752 = smul.addr %s751, 4
        %s753 = smul.addr %s752, 4
        %s754 = scalar_lea.vmem %s6, %s753
        %p755 = scmp.lt.s32.totalorder %s32, 1
        %s756 = scalar_select %p755, %s32, 1
        %s757 = scalar_lea.vmem %s7, %s756
        %p758 = scmp.lt.s32.totalorder %s32, 1
        %s759 = scalar_select %p758, %s32, 1
        %s760 = smul.addr %s759, 4
        %s761 = smul.addr %s760, 4
        %s762 = scalar_lea.vmem %s8, %s761
        %p763 = scmp.lt.s32.totalorder %s32, 1
        %s764 = scalar_select %p763, %s32, 1
        %s765 = scalar_lea.vmem %s9, %s764
        %p766 = scmp.lt.s32.totalorder %s32, 1
        %s767 = scalar_select %p766, %s32, 1
        %s768 = scalar_lea.vmem %s10, %s767
        %p769 = scmp.lt.s32.totalorder %s32, 1
        %s770 = scalar_select %p769, %s32, 1
        %s771 = scalar_lea.vmem %s11, %s770
        %p772 = scmp.lt.s32.totalorder %s32, 1
        %s773 = scalar_select %p772, %s32, 1
        %s774 = smul.addr %s773, 4
        %s775 = smul.addr %s774, 4
        %s776 = scalar_lea.vmem %s12, %s775
        %p777 = scmp.lt.s32.totalorder %s32, 1
        %s778 = scalar_select %p777, %s32, 1
        %s779 = scalar_lea.vmem %s13, %s778
        %p780 = scmp.lt.s32.totalorder %s32, 1
        %s781 = scalar_select %p780, %s32, 1
        %s782 = smul.addr %s781, 16
        %s783 = smul.addr %s782, 4
        %s784 = scalar_lea.vmem %s14, %s783
        %p785 = scmp.lt.s32.totalorder %s32, 1
        %s786 = scalar_select %p785, %s32, 1
        %s787 = scalar_lea.vmem %s15, %s786
        %p789 = scmp.eq.s32.totalorder %s32, 0
        // Predicated region
        $region101: #{foundationmodel_forward.1} parent=99 // pred_check
          %p790 = pneg %p789
        $region102: #{foundationmodel_forward.1} parent=99 // pred_check_branch
          %792 = sbr.rel (%p790) target = $region104
        $region103: #{foundationmodel_forward.1} parent=99 // pred_region
          %v793 = vld [vmem:[%s0] sm:$0xff]
          %v794 = vld [vmem:[%s0 + $0x8] sm:$0xff]
          %v795 = vld [vmem:[%s0 + $0x10] sm:$0xff]
          %v796 = vld [vmem:[%s0 + $0x18] sm:$0xff]
          %v797 = vld [vmem:[%s0 + $0x20] sm:$0xff]
          %v798 = vld [vmem:[%s0 + $0x28] sm:$0xff]
          %v799 = vld [vmem:[%s3] sm:$0xf]
          %v800 = vld [vmem:[%s3 + $0x4] sm:$0xf]
          %v801 = vld [vmem:[%s3 + $0x8] sm:$0xf]
          %v802 = vld [vmem:[%s3 + $0xc] sm:$0xf]
          %v803 = vld [vmem:[%s3 + $0x10] sm:$0xf]
          %v804 = vld [vmem:[%s3 + $0x14] sm:$0xf]
          %v805 = vld [vmem:[%s3 + $0x18] sm:$0xf]
          %v806 = vld [vmem:[%s3 + $0x1c] sm:$0xf]
          %v807 = vld [vmem:[%s3 + $0x20] sm:$0xf]
          %v808 = vld [vmem:[%s3 + $0x24] sm:$0xf]
          %v809 = vld [vmem:[%s3 + $0x28] sm:$0xf]
          %v810 = vld [vmem:[%s3 + $0x2c] sm:$0xf]
          %v811 = vld [vmem:[%s3 + $0x30] sm:$0xf]
          %v812 = vld [vmem:[%s3 + $0x34] sm:$0xf]
          %v813 = vld [vmem:[%s3 + $0x38] sm:$0xf]
          %v814 = vld [vmem:[%s3 + $0x3c] sm:$0xf]
          %v815 = vld [vmem:[%s3 + $0x40] sm:$0xf]
          %v816 = vld [vmem:[%s3 + $0x44] sm:$0xf]
          %v817 = vld [vmem:[%s3 + $0x48] sm:$0xf]
          %v818 = vld [vmem:[%s3 + $0x4c] sm:$0xf]
          %v819 = vld [vmem:[%s3 + $0x50] sm:$0xf]
          %v820 = vld [vmem:[%s3 + $0x54] sm:$0xf]
          %v821 = vld [vmem:[%s3 + $0x58] sm:$0xf]
          %v822 = vld [vmem:[%s3 + $0x5c] sm:$0xf]
          %v823 = vld [vmem:[%s3 + $0x60] sm:$0xf]
          %v824 = vld [vmem:[%s3 + $0x64] sm:$0xf]
          %v825 = vld [vmem:[%s3 + $0x68] sm:$0xf]
          %v826 = vld [vmem:[%s3 + $0x6c] sm:$0xf]
          %v827 = vld [vmem:[%s3 + $0x70] sm:$0xf]
          %v828 = vld [vmem:[%s3 + $0x74] sm:$0xf]
          %v829 = vld [vmem:[%s3 + $0x78] sm:$0xf]
          %v830 = vld [vmem:[%s3 + $0x7c] sm:$0xf]
          %v831 = vld [vmem:[%s3 + $0x80] sm:$0xf]
          %v832 = vld [vmem:[%s3 + $0x84] sm:$0xf]
          %v833 = vld [vmem:[%s3 + $0x88] sm:$0xf]
          %v834 = vld [vmem:[%s3 + $0x8c] sm:$0xf]
          %v835 = vld [vmem:[%s3 + $0x90] sm:$0xf]
          %v836 = vld [vmem:[%s3 + $0x94] sm:$0xf]
          %v837 = vld [vmem:[%s3 + $0x98] sm:$0xf]
          %v838 = vld [vmem:[%s3 + $0x9c] sm:$0xf]
          %v839 = vld [vmem:[%s3 + $0xa0] sm:$0xf]
          %v840 = vld [vmem:[%s3 + $0xa4] sm:$0xf]
          %v841 = vld [vmem:[%s3 + $0xa8] sm:$0xf]
          %v842 = vld [vmem:[%s3 + $0xac] sm:$0xf]
          %v843 = vld [vmem:[%s3 + $0xb0] sm:$0xf]
          %v844 = vld [vmem:[%s3 + $0xb4] sm:$0xf]
          %v845 = vld [vmem:[%s3 + $0xb8] sm:$0xf]
          %v846 = vld [vmem:[%s3 + $0xbc] sm:$0xf]
          %v847 = vld [vmem:[%s3 + $0xc0] sm:$0xf]
          %v848 = vld [vmem:[%s3 + $0xc4] sm:$0xf]
          %v849 = vld [vmem:[%s3 + $0xc8] sm:$0xf]
          %v850 = vld [vmem:[%s3 + $0xcc] sm:$0xf]
          %v851 = vld [vmem:[%s3 + $0xd0] sm:$0xf]
          %v852 = vld [vmem:[%s3 + $0xd4] sm:$0xf]
          %v853 = vld [vmem:[%s3 + $0xd8] sm:$0xf]
          %v854 = vld [vmem:[%s3 + $0xdc] sm:$0xf]
          %v855 = vld [vmem:[%s3 + $0xe0] sm:$0xf]
          %v856 = vld [vmem:[%s3 + $0xe4] sm:$0xf]
          %v857 = vld [vmem:[%s3 + $0xe8] sm:$0xf]
          %v858 = vld [vmem:[%s3 + $0xec] sm:$0xf]
          %v859 = vld [vmem:[%s3 + $0xf0] sm:$0xf]
          %v860 = vld [vmem:[%s3 + $0xf4] sm:$0xf]
          %v861 = vld [vmem:[%s3 + $0xf8] sm:$0xf]
          %v862 = vld [vmem:[%s3 + $0xfc] sm:$0xf]
          %v863 = vld [vmem:[%s3 + $0x100] sm:$0xf]
          %v864 = vld [vmem:[%s3 + $0x104] sm:$0xf]
          %v865 = vld [vmem:[%s3 + $0x108] sm:$0xf]
          %v866 = vld [vmem:[%s3 + $0x10c] sm:$0xf]
          %v867 = vld [vmem:[%s3 + $0x110] sm:$0xf]
          %v868 = vld [vmem:[%s3 + $0x114] sm:$0xf]
          %v869 = vld [vmem:[%s3 + $0x118] sm:$0xf]
          %v870 = vld [vmem:[%s3 + $0x11c] sm:$0xf]
          %v871 = vld [vmem:[%s3 + $0x120] sm:$0xf]
          %v872 = vld [vmem:[%s3 + $0x124] sm:$0xf]
          %v873 = vld [vmem:[%s3 + $0x128] sm:$0xf]
          %v874 = vld [vmem:[%s3 + $0x12c] sm:$0xf]
          %v875 = vld [vmem:[%s3 + $0x130] sm:$0xf]
          %v876 = vld [vmem:[%s3 + $0x134] sm:$0xf]
          %v877 = vld [vmem:[%s3 + $0x138] sm:$0xf]
          %v878 = vld [vmem:[%s3 + $0x13c] sm:$0xf]
          %v879 = vld [vmem:[%s3 + $0x140] sm:$0xf]
          %v880 = vld [vmem:[%s3 + $0x144] sm:$0xf]
          %v881 = vld [vmem:[%s3 + $0x148] sm:$0xf]
          %v882 = vld [vmem:[%s3 + $0x14c] sm:$0xf]
          %v883 = vld [vmem:[%s3 + $0x150] sm:$0xf]
          %v884 = vld [vmem:[%s3 + $0x154] sm:$0xf]
          %v885 = vld [vmem:[%s3 + $0x158] sm:$0xf]
          %v886 = vld [vmem:[%s3 + $0x15c] sm:$0xf]
          %v887 = vld [vmem:[%s3 + $0x160] sm:$0xf]
          %v888 = vld [vmem:[%s3 + $0x164] sm:$0xf]
          %v889 = vld [vmem:[%s3 + $0x168] sm:$0xf]
          %v890 = vld [vmem:[%s3 + $0x16c] sm:$0xf]
          %v891 = vld [vmem:[%s3 + $0x170] sm:$0xf]
          %v892 = vld [vmem:[%s3 + $0x174] sm:$0xf]
          %v893 = vld [vmem:[%s3 + $0x178] sm:$0xf]
          %v894 = vld [vmem:[%s3 + $0x17c] sm:$0xf]
          %v895 = vld [vmem:[%s1] sm:$0xff]
          %v896 = vld [vmem:[%s1 + $0x8] sm:$0xff]
          %v903 = vunpack.c.l.b16 %v793
          %v904 = vunpack.c.h.b16 %v793
          %v905 = vunpack.c.l.b16 %v794
          %v906 = vunpack.c.h.b16 %v794
          %v907 = vunpack.c.l.b16 %v795
          %v908 = vunpack.c.h.b16 %v795
          %v909 = vunpack.c.l.b16 %v796
          %v910 = vunpack.c.h.b16 %v796
          %v911 = vunpack.c.l.b16 %v797
          %v912 = vunpack.c.h.b16 %v797
          %v913 = vunpack.c.l.b16 %v798
          %v914 = vunpack.c.h.b16 %v798
          %v915 = vpack.c.b16 %v909, %v903
          %v916 = vpack.c.b16 %v910, %v904
          %v917 = vpack.c.b16 %v911, %v905
          %v918 = vpack.c.b16 %v912, %v906
          %v919 = vpack.c.b16 %v913, %v907
          %v920 = vpack.c.b16 %v914, %v908
          %v1023 = vunpack.c.l.b16 %v799
          %v1024 = vunpack.c.l.b16 %v800
          %v1025 = vunpack.c.l.b16 %v801
          %v1026 = vunpack.c.l.b16 %v802
          %v1027 = vunpack.c.l.b16 %v803
          %v1028 = vunpack.c.l.b16 %v804
          %v1029 = vunpack.c.l.b16 %v805
          %v1030 = vunpack.c.l.b16 %v806
          %v1031 = vunpack.c.l.b16 %v807
          %v1032 = vunpack.c.l.b16 %v808
          %v1033 = vunpack.c.l.b16 %v809
          %v1034 = vunpack.c.l.b16 %v810
          %v1035 = vunpack.c.l.b16 %v811
          %v1036 = vunpack.c.l.b16 %v812
          %v1037 = vunpack.c.l.b16 %v813
          %v1038 = vunpack.c.l.b16 %v814
          %v1039 = vunpack.c.l.b16 %v815
          %v1040 = vunpack.c.l.b16 %v816
          %v1041 = vunpack.c.l.b16 %v817
          %v1042 = vunpack.c.l.b16 %v818
          %v1043 = vunpack.c.l.b16 %v819
          %v1044 = vunpack.c.l.b16 %v820
          %v1045 = vunpack.c.l.b16 %v821
          %v1046 = vunpack.c.l.b16 %v822
          %v1047 = vunpack.c.l.b16 %v823
          %v1048 = vunpack.c.l.b16 %v824
          %v1049 = vunpack.c.l.b16 %v825
          %v1050 = vunpack.c.l.b16 %v826
          %v1051 = vunpack.c.l.b16 %v827
          %v1052 = vunpack.c.l.b16 %v828
          %v1053 = vunpack.c.l.b16 %v829
          %v1054 = vunpack.c.l.b16 %v830
          %v1055 = vunpack.c.l.b16 %v831
          %v1056 = vunpack.c.l.b16 %v832
          %v1057 = vunpack.c.l.b16 %v833
          %v1058 = vunpack.c.l.b16 %v834
          %v1059 = vunpack.c.l.b16 %v835
          %v1060 = vunpack.c.l.b16 %v836
          %v1061 = vunpack.c.l.b16 %v837
          %v1062 = vunpack.c.l.b16 %v838
          %v1063 = vunpack.c.l.b16 %v839
          %v1064 = vunpack.c.l.b16 %v840
          %v1065 = vunpack.c.l.b16 %v841
          %v1066 = vunpack.c.l.b16 %v842
          %v1067 = vunpack.c.l.b16 %v843
          %v1068 = vunpack.c.l.b16 %v844
          %v1069 = vunpack.c.l.b16 %v845
          %v1070 = vunpack.c.l.b16 %v846
          %v1071 = vunpack.c.l.b16 %v847
          %v1072 = vunpack.c.l.b16 %v848
          %v1073 = vunpack.c.l.b16 %v849
          %v1074 = vunpack.c.l.b16 %v850
          %v1075 = vunpack.c.l.b16 %v851
          %v1076 = vunpack.c.l.b16 %v852
          %v1077 = vunpack.c.l.b16 %v853
          %v1078 = vunpack.c.l.b16 %v854
          %v1079 = vunpack.c.l.b16 %v855
          %v1080 = vunpack.c.l.b16 %v856
          %v1081 = vunpack.c.l.b16 %v857
          %v1082 = vunpack.c.l.b16 %v858
          %v1083 = vunpack.c.l.b16 %v859
          %v1084 = vunpack.c.l.b16 %v860
          %v1085 = vunpack.c.l.b16 %v861
          %v1086 = vunpack.c.l.b16 %v862
          %v1087 = vunpack.c.l.b16 %v863
          %v1088 = vunpack.c.l.b16 %v864
          %v1089 = vunpack.c.l.b16 %v865
          %v1090 = vunpack.c.l.b16 %v866
          %v1091 = vunpack.c.l.b16 %v867
          %v1092 = vunpack.c.l.b16 %v868
          %v1093 = vunpack.c.l.b16 %v869
          %v1094 = vunpack.c.l.b16 %v870
          %v1095 = vunpack.c.l.b16 %v871
          %v1096 = vunpack.c.l.b16 %v872
          %v1097 = vunpack.c.l.b16 %v873
          %v1098 = vunpack.c.l.b16 %v874
          %v1099 = vunpack.c.l.b16 %v875
          %v1100 = vunpack.c.l.b16 %v876
          %v1101 = vunpack.c.l.b16 %v877
          %v1102 = vunpack.c.l.b16 %v878
          %v1103 = vunpack.c.l.b16 %v879
          %v1104 = vunpack.c.l.b16 %v880
          %v1105 = vunpack.c.l.b16 %v881
          %v1106 = vunpack.c.l.b16 %v882
          %v1107 = vunpack.c.l.b16 %v883
          %v1108 = vunpack.c.l.b16 %v884
          %v1109 = vunpack.c.l.b16 %v885
          %v1110 = vunpack.c.l.b16 %v886
          %v1111 = vunpack.c.l.b16 %v887
          %v1112 = vunpack.c.l.b16 %v888
          %v1113 = vunpack.c.l.b16 %v889
          %v1114 = vunpack.c.l.b16 %v890
          %v1115 = vunpack.c.l.b16 %v891
          %v1116 = vunpack.c.l.b16 %v892
          %v1117 = vunpack.c.l.b16 %v893
          %v1118 = vunpack.c.l.b16 %v894
          %v1119 = vpack.c.b16 %v1024, %v1023
          %v1120 = vpack.c.b16 %v1026, %v1025
          %v1121 = vpack.c.b16 %v1028, %v1027
          %v1122 = vpack.c.b16 %v1030, %v1029
          %v1123 = vpack.c.b16 %v1032, %v1031
          %v1124 = vpack.c.b16 %v1034, %v1033
          %v1125 = vpack.c.b16 %v1036, %v1035
          %v1126 = vpack.c.b16 %v1038, %v1037
          %v1127 = vpack.c.b16 %v1040, %v1039
          %v1128 = vpack.c.b16 %v1042, %v1041
          %v1129 = vpack.c.b16 %v1044, %v1043
          %v1130 = vpack.c.b16 %v1046, %v1045
          %v1131 = vpack.c.b16 %v1048, %v1047
          %v1132 = vpack.c.b16 %v1050, %v1049
          %v1133 = vpack.c.b16 %v1052, %v1051
          %v1134 = vpack.c.b16 %v1054, %v1053
          %v1135 = vpack.c.b16 %v1056, %v1055
          %v1136 = vpack.c.b16 %v1058, %v1057
          %v1137 = vpack.c.b16 %v1060, %v1059
          %v1138 = vpack.c.b16 %v1062, %v1061
          %v1139 = vpack.c.b16 %v1064, %v1063
          %v1140 = vpack.c.b16 %v1066, %v1065
          %v1141 = vpack.c.b16 %v1068, %v1067
          %v1142 = vpack.c.b16 %v1070, %v1069
          %v1143 = vpack.c.b16 %v1072, %v1071
          %v1144 = vpack.c.b16 %v1074, %v1073
          %v1145 = vpack.c.b16 %v1076, %v1075
          %v1146 = vpack.c.b16 %v1078, %v1077
          %v1147 = vpack.c.b16 %v1080, %v1079
          %v1148 = vpack.c.b16 %v1082, %v1081
          %v1149 = vpack.c.b16 %v1084, %v1083
          %v1150 = vpack.c.b16 %v1086, %v1085
          %v1151 = vpack.c.b16 %v1088, %v1087
          %v1152 = vpack.c.b16 %v1090, %v1089
          %v1153 = vpack.c.b16 %v1092, %v1091
          %v1154 = vpack.c.b16 %v1094, %v1093
          %v1155 = vpack.c.b16 %v1096, %v1095
          %v1156 = vpack.c.b16 %v1098, %v1097
          %v1157 = vpack.c.b16 %v1100, %v1099
          %v1158 = vpack.c.b16 %v1102, %v1101
          %v1159 = vpack.c.b16 %v1104, %v1103
          %v1160 = vpack.c.b16 %v1106, %v1105
          %v1161 = vpack.c.b16 %v1108, %v1107
          %v1162 = vpack.c.b16 %v1110, %v1109
          %v1163 = vpack.c.b16 %v1112, %v1111
          %v1164 = vpack.c.b16 %v1114, %v1113
          %v1165 = vpack.c.b16 %v1116, %v1115
          %v1166 = vpack.c.b16 %v1118, %v1117
          %1215 = vmatpush.bf16.msra.mxu0 %v1126
          %1216 = vmatpush.bf16.msra.mxu0 %v1125
          %1217 = vmatpush.bf16.msra.mxu0 %v1124
          %1218 = vmatpush.bf16.msra.mxu0 %v1123
          %1219 = vmatpush.bf16.msra.mxu0 %v1122
          %1220 = vmatpush.bf16.msra.mxu0 %v1121
          %1221 = vmatpush.bf16.msra.mxu0 %v1120
          %1222 = vmatpush.bf16.msra.mxu0 %v1119
          %1223 = vmatmul.bf16.gmra.mxu0 %v915
          %v1224 = vpop.f32.mrf.mxu0
          %v1225 = vadd.f32 %v895, %v1224
          %v1226 = vpop.f32.mrf.mxu0
          %v1227 = vadd.f32 %v896, %v1226
          %1228 = vdwg.mxu0
          %1229 = vmatpush.bf16.msra.mxu0 %v1134
          %1230 = vmatpush.bf16.msra.mxu0 %v1133
          %1231 = vmatpush.bf16.msra.mxu0 %v1132
          %1232 = vmatpush.bf16.msra.mxu0 %v1131
          %1233 = vmatpush.bf16.msra.mxu0 %v1130
          %1234 = vmatpush.bf16.msra.mxu0 %v1129
          %1235 = vmatpush.bf16.msra.mxu0 %v1128
          %1236 = vmatpush.bf16.msra.mxu0 %v1127
          %1237 = vmatmul.bf16.gmra.mxu0 %v916
          %v1238 = vpop.f32.mrf.mxu0
          %v1239 = vadd.f32 %v1225, %v1238
          %v1240 = vpop.f32.mrf.mxu0
          %v1241 = vadd.f32 %v1227, %v1240
          %1242 = vdwg.mxu0
          %1243 = vmatpush.bf16.msra.mxu0 %v1142
          %1244 = vmatpush.bf16.msra.mxu0 %v1141
          %1245 = vmatpush.bf16.msra.mxu0 %v1140
          %1246 = vmatpush.bf16.msra.mxu0 %v1139
          %1247 = vmatpush.bf16.msra.mxu0 %v1138
          %1248 = vmatpush.bf16.msra.mxu0 %v1137
          %1249 = vmatpush.bf16.msra.mxu0 %v1136
          %1250 = vmatpush.bf16.msra.mxu0 %v1135
          %1251 = vmatmul.bf16.gmra.mxu0 %v917
          %v1252 = vpop.f32.mrf.mxu0
          %v1253 = vadd.f32 %v1239, %v1252
          %v1254 = vpop.f32.mrf.mxu0
          %v1255 = vadd.f32 %v1241, %v1254
          %1256 = vdwg.mxu0
          %1257 = vmatpush.bf16.msra.mxu0 %v1150
          %1258 = vmatpush.bf16.msra.mxu0 %v1149
          %1259 = vmatpush.bf16.msra.mxu0 %v1148
          %1260 = vmatpush.bf16.msra.mxu0 %v1147
          %1261 = vmatpush.bf16.msra.mxu0 %v1146
          %1262 = vmatpush.bf16.msra.mxu0 %v1145
          %1263 = vmatpush.bf16.msra.mxu0 %v1144
          %1264 = vmatpush.bf16.msra.mxu0 %v1143
          %1265 = vmatmul.bf16.gmra.mxu0 %v918
          %v1266 = vpop.f32.mrf.mxu0
          %v1267 = vadd.f32 %v1253, %v1266
          %v1268 = vpop.f32.mrf.mxu0
          %v1269 = vadd.f32 %v1255, %v1268
          %1270 = vdwg.mxu0
          %1271 = vmatpush.bf16.msra.mxu0 %v1158
          %1272 = vmatpush.bf16.msra.mxu0 %v1157
          %1273 = vmatpush.bf16.msra.mxu0 %v1156
          %1274 = vmatpush.bf16.msra.mxu0 %v1155
          %1275 = vmatpush.bf16.msra.mxu0 %v1154
          %1276 = vmatpush.bf16.msra.mxu0 %v1153
          %1277 = vmatpush.bf16.msra.mxu0 %v1152
          %1278 = vmatpush.bf16.msra.mxu0 %v1151
          %1279 = vmatmul.bf16.gmra.mxu0 %v919
          %v1280 = vpop.f32.mrf.mxu0
          %v1281 = vadd.f32 %v1267, %v1280
          %v1282 = vpop.f32.mrf.mxu0
          %v1283 = vadd.f32 %v1269, %v1282
          %1284 = vdwg.mxu0
          %1285 = vmatpush.bf16.msra.mxu0 %v1166
          %1286 = vmatpush.bf16.msra.mxu0 %v1165
          %1287 = vmatpush.bf16.msra.mxu0 %v1164
          %1288 = vmatpush.bf16.msra.mxu0 %v1163
          %1289 = vmatpush.bf16.msra.mxu0 %v1162
          %1290 = vmatpush.bf16.msra.mxu0 %v1161
          %1291 = vmatpush.bf16.msra.mxu0 %v1160
          %1292 = vmatpush.bf16.msra.mxu0 %v1159
          %1293 = vmatmul.bf16.gmra.mxu0 %v920
          %v1294 = vpop.f32.mrf.mxu0
          %v1295 = vadd.f32 %v1281, %v1294
          %v1296 = vpop.f32.mrf.mxu0
          %v1297 = vadd.f32 %v1283, %v1296
          %1298 = vdwg.mxu0
          %vm1299 = vcmask 261120
          %1300 = vst.msk [vmem:[#allocation2] sm:$0xff] %vm1299, %v1295
          %1301 = vst.msk [vmem:[#allocation2 + $0x8] sm:$0xff] %vm1299, %v1297
        $region104: #{foundationmodel_forward.1} parent=99 // pred_fallthru
          _
        %v1302 = vld [vmem:[#allocation2] sm:$0xff]
        %v1303 = vld [vmem:[#allocation2 + $0x8] sm:$0xff]
        %v1304 = vld [vmem:[%s746] sm:$0x1]
        %v1305 = vld [vmem:[%s749] sm:$0x1]
        %vm1306 = vcmask 261120
        %v1307 = vsel %vm1306, %v1302, 0.0
        %1308 = vadd.xlane.f32.xlu0 %v1307
        %v1309 = vpop.xlane.xlu0 %1308
        %v1310 = vsel %vm1306, %v1303, 0.0
        %1311 = vadd.xlane.f32.xlu0 %v1310
        %v1312 = vpop.xlane.xlu0 %1311
        %v1313 = vrcp.pop 32.0
        %v1314 = vmul.f32 32.0, %v1313
        %v1315 = vsub.f32 1.0, %v1314
        %v1316 = vmul.f32 %v1313, %v1315
        %v1317 = vadd.f32 %v1313, %v1316
        %vm1318 = vweird.f32 %v1313
        %v1319 = vsel %vm1318, %v1313, %v1317
        %v1320 = vmul.f32 %v1309, %v1319
        %v1321 = vmul.f32 %v1312, %v1319
        %v1322 = vsub.f32 %v1302, %v1320
        %v1323 = vsub.f32 %v1303, %v1321
        %v1324 = vmul.f32 %v1322, %v1322
        %v1325 = vmul.f32 %v1323, %v1323
        %v1326 = vsel %vm1306, %v1324, 0.0
        %1327 = vadd.xlane.f32.xlu0 %v1326
        %v1328 = vpop.xlane.xlu0 %1327
        %v1329 = vsel %vm1306, %v1325, 0.0
        %1330 = vadd.xlane.f32.xlu0 %v1329
        %v1331 = vpop.xlane.xlu0 %1330
        %v1332 = vmul.f32 %v1328, %v1319
        %v1333 = vmul.f32 %v1331, %v1319
        %v1334 = vadd.f32 %v1332, 1e-06
        %v1335 = vadd.f32 %v1333, 1e-06
        %v1336 = vrsqrt.pop %v1334
        %v1337 = vmul.f32 %v1336, %v1334
        %v1338 = vmul.f32 %v1337, %v1336
        %v1339 = vmul.f32 0.5, %v1338
        %v1340 = vsub.f32 1.5, %v1339
        %v1341 = vmul.f32 %v1336, %v1340
        %vm1342 = vweird.f32 %v1334
        %vm1343 = vweird.f32 %v1336
        %vm1344 = vmor %vm1342, %vm1343
        %v1345 = vsel %vm1344, %v1336, %v1341
        %v1346 = vrsqrt.pop %v1335
        %v1347 = vmul.f32 %v1346, %v1335
        %v1348 = vmul.f32 %v1347, %v1346
        %v1349 = vmul.f32 0.5, %v1348
        %v1350 = vsub.f32 1.5, %v1349
        %v1351 = vmul.f32 %v1346, %v1350
        %vm1352 = vweird.f32 %v1335
        %vm1353 = vweird.f32 %v1346
        %vm1354 = vmor %vm1352, %vm1353
        %v1355 = vsel %vm1354, %v1346, %v1351
        %v1356 = vmul.f32 %v1322, %v1345
        %v1357 = vmul.f32 %v1323, %v1355
        %v1359 = vperm.slane %v1304, 0
        %v1361 = vmul.f32 %v1356, %v1359
        %v1362 = vmul.f32 %v1357, %v1359
        %v1364 = vperm.slane %v1305, 0
        %v1366 = vadd.f32 %v1361, %v1364
        %v1367 = vadd.f32 %v1362, %v1364
        %v1368 = vpack.c.bf16 %v1367, %v1366
        %v1369 = vld [vmem:[%s754] sm:$0xf]
        %v1370 = vld [vmem:[%s754 + $0x4] sm:$0xf]
        %v1371 = vld [vmem:[%s754 + $0x8] sm:$0xf]
        %v1372 = vld [vmem:[%s754 + $0xc] sm:$0xf]
        %v1373 = vld [vmem:[%s757] sm:$0x1]
        %v1375 = vperm.slane %v1373, 0
        %v1381 = vunpack.c.l.b16 %v1369
        %v1382 = vunpack.c.l.b16 %v1370
        %v1383 = vunpack.c.l.b16 %v1371
        %v1384 = vunpack.c.l.b16 %v1372
        %v1385 = vpack.c.b16 %v1382, %v1381
        %v1386 = vpack.c.b16 %v1384, %v1383
        %v1390 = vsel %vm1306, %v1368, 0
        %1392 = vmatpush.bf16.msra.mxu0 0
        %1393 = vmatpush.bf16.msra.mxu0 0
        %1394 = vmatpush.bf16.msra.mxu0 0
        %1395 = vmatpush.bf16.msra.mxu0 0
        %1396 = vmatpush.bf16.msra.mxu0 0
        %1397 = vmatpush.bf16.msra.mxu0 0
        %1398 = vmatpush.bf16.msra.mxu0 %v1386
        %1399 = vmatpush.bf16.msra.mxu0 %v1385
        %1400 = vmatmul.bf16.gmra.mxu0 %v1390
        %v1401 = vpop.f32.mrf.mxu0
        %v1402 = vadd.f32 %v1375, %v1401
        %v1403 = vpop.f32.mrf.mxu0
        %v1404 = vadd.f32 %v1375, %v1403
        %1405 = vdwg.mxu0
        %v1406 = vpack.c.bf16 %v1402, %v1402
        %v1407 = vpack.c.bf16 %v1404, %v1404
        %v1408 = vld [vmem:[%s762] sm:$0xf]
        %v1409 = vld [vmem:[%s762 + $0x4] sm:$0xf]
        %v1410 = vld [vmem:[%s762 + $0x8] sm:$0xf]
        %v1411 = vld [vmem:[%s762 + $0xc] sm:$0xf]
        %v1412 = vld [vmem:[%s765] sm:$0x1]
        %v1413 = vld [vmem:[%s2] sm:$0xff]
        %v1414 = vld [vmem:[%s2 + $0x8] sm:$0xff]
        %v1417 = vunpack.c.l.b16 %v1406
        %v1418 = vunpack.c.l.b16 %v1407
        %v1419 = vpack.c.b16 %v1418, %v1417
        %1420 = vrot.lane.b32.xlu0 %v1419, 96
        %v1421 = vpop.permute.xlu0 %1420
        %vm1422 = vcmask 64512
        %v1424 = vsel %vm1422, %v1419, 0
        %v1427 = vsel %vm1422, %v1421, 0
        %1429 = vmatpush.bf16.xpose.msra.mxu0 0
        %1430 = vmatpush.bf16.xpose.msra.mxu0 0
        %1431 = vmatpush.bf16.xpose.msra.mxu0 0
        %1432 = vmatpush.bf16.xpose.msra.mxu0 0
        %1433 = vmatpush.bf16.xpose.msra.mxu0 0
        %1434 = vmatpush.bf16.xpose.msra.mxu0 0
        %1435 = vmatpush.bf16.xpose.msra.mxu0 0
        %1436 = vmatpush.bf16.xpose.msra.mxu0 %v1427
        %1437 = vmatmul.bf16.gmra.mxu0 %v1424
        %v1438 = vpop.f32.mrf.mxu0
        %v1439 = vadd.f32 0.0, %v1438
        %v1440 = vpop.f32.mrf.mxu0
        %v1441 = vadd.f32 0.0, %v1440
        %1442 = vdwg.mxu0
        %v1443 = vmul.f32 %v1439, 0.35355338
        %v1444 = vmul.f32 %v1441, 0.35355338
        %v1445 = vadd.f32 %v1443, %v1413
        %v1446 = vadd.f32 %v1444, %v1414
        %vm1447 = vcmask 130048
        %v1448 = vsel %vm1447, %v1445, -inf
        %1449 = vmax.xlane.f32.xlu0 %v1448
        %v1450 = vpop.xlane.xlu0 %1449
        %v1451 = vsel %vm1447, %v1446, -inf
        %1452 = vmax.xlane.f32.xlu0 %v1451
        %v1453 = vpop.xlane.xlu0 %1452
        %v1454 = vsub.f32 %v1445, %v1450
        %v1455 = vsub.f32 %v1446, %v1453
        %v1456 = vmul.f32 %v1454, 1.442695
        %v1457 = vpow.pop %v1456
        %v1458 = vmul.f32 %v1455, 1.442695
        %v1459 = vpow.pop %v1458
        %v1460 = vsel %vm1447, %v1457, 0.0
        %1461 = vadd.xlane.f32.xlu0 %v1460
        %v1462 = vpop.xlane.xlu0 %1461
        %v1463 = vsel %vm1447, %v1459, 0.0
        %1464 = vadd.xlane.f32.xlu0 %v1463
        %v1465 = vpop.xlane.xlu0 %1464
        %v1466 = vrcp.pop %v1462
        %v1467 = vrcp.pop %v1465
        %v1468 = vmul.f32 %v1457, %v1466
        %v1469 = vmul.f32 %v1459, %v1467
        %v1470 = vpack.c.bf16 %v1469, %v1468
        %1471 = vrot.lane.b32.xlu0 %v1419, 64
        %v1472 = vpop.permute.xlu0 %1471
        %v1475 = vsel %vm1447, %v1470, 0
        %1477 = vmatpush.bf16.msra.mxu0 0
        %1478 = vmatpush.bf16.msra.mxu0 0
        %1479 = vmatpush.bf16.msra.mxu0 0
        %1480 = vmatpush.bf16.msra.mxu0 0
        %1481 = vmatpush.bf16.msra.mxu0 0
        %1482 = vmatpush.bf16.msra.mxu0 0
        %1483 = vmatpush.bf16.msra.mxu0 0
        %1484 = vmatpush.bf16.msra.mxu0 %v1472
        %1485 = vmatmul.bf16.gmra.mxu0 %v1475
        %v1486 = vpop.f32.mrf.mxu0
        %v1487 = vadd.f32 0.0, %v1486
        %v1488 = vpop.f32.mrf.mxu0
        %v1489 = vadd.f32 0.0, %v1488
        %1490 = vdwg.mxu0
        %v1491 = vpack.c.bf16 %v1489, %v1487
        %1492 = vrot.lane.b32.xlu0 %v1419, 120
        %v1493 = vpop.permute.xlu0 %1492
        %1494 = vrot.lane.b32.xlu0 %v1419, 88
        %v1495 = vpop.permute.xlu0 %1494
        %v1497 = vsel %vm1422, %v1493, 0
        %v1500 = vsel %vm1422, %v1495, 0
        %1502 = vmatpush.bf16.xpose.msra.mxu0 0
        %1503 = vmatpush.bf16.xpose.msra.mxu0 0
        %1504 = vmatpush.bf16.xpose.msra.mxu0 0
        %1505 = vmatpush.bf16.xpose.msra.mxu0 0
        %1506 = vmatpush.bf16.xpose.msra.mxu0 0
        %1507 = vmatpush.bf16.xpose.msra.mxu0 0
        %1508 = vmatpush.bf16.xpose.msra.mxu0 0
        %1509 = vmatpush.bf16.xpose.msra.mxu0 %v1500
        %1510 = vmatmul.bf16.gmra.mxu0 %v1497
        %v1511 = vpop.f32.mrf.mxu0
        %v1512 = vadd.f32 0.0, %v1511
        %v1513 = vpop.f32.mrf.mxu0
        %v1514 = vadd.f32 0.0, %v1513
        %1515 = vdwg.mxu0
        %v1516 = vmul.f32 %v1512, 0.35355338
        %v1517 = vmul.f32 %v1514, 0.35355338
        %v1518 = vadd.f32 %v1516, %v1413
        %v1519 = vadd.f32 %v1517, %v1414
        %v1520 = vsel %vm1447, %v1518, -inf
        %1521 = vmax.xlane.f32.xlu0 %v1520
        %v1522 = vpop.xlane.xlu0 %1521
        %v1523 = vsel %vm1447, %v1519, -inf
        %1524 = vmax.xlane.f32.xlu0 %v1523
        %v1525 = vpop.xlane.xlu0 %1524
        %v1526 = vsub.f32 %v1518, %v1522
        %v1527 = vsub.f32 %v1519, %v1525
        %v1528 = vmul.f32 %v1526, 1.442695
        %v1529 = vpow.pop %v1528
        %v1530 = vmul.f32 %v1527, 1.442695
        %v1531 = vpow.pop %v1530
        %v1532 = vsel %vm1447, %v1529, 0.0
        %1533 = vadd.xlane.f32.xlu0 %v1532
        %v1534 = vpop.xlane.xlu0 %1533
        %v1535 = vsel %vm1447, %v1531, 0.0
        %1536 = vadd.xlane.f32.xlu0 %v1535
        %v1537 = vpop.xlane.xlu0 %1536
        %v1538 = vrcp.pop %v1534
        %v1539 = vrcp.pop %v1537
        %v1540 = vmul.f32 %v1529, %v1538
        %v1541 = vmul.f32 %v1531, %v1539
        %v1542 = vpack.c.bf16 %v1541, %v1540
        %1543 = vrot.lane.b32.xlu0 %v1419, 56
        %v1544 = vpop.permute.xlu0 %1543
        %v1547 = vsel %vm1447, %v1542, 0
        %1549 = vmatpush.bf16.msra.mxu0 0
        %1550 = vmatpush.bf16.msra.mxu0 0
        %1551 = vmatpush.bf16.msra.mxu0 0
        %1552 = vmatpush.bf16.msra.mxu0 0
        %1553 = vmatpush.bf16.msra.mxu0 0
        %1554 = vmatpush.bf16.msra.mxu0 0
        %1555 = vmatpush.bf16.msra.mxu0 0
        %1556 = vmatpush.bf16.msra.mxu0 %v1544
        %1557 = vmatmul.bf16.gmra.mxu0 %v1547
        %v1558 = vpop.f32.mrf.mxu0
        %v1559 = vadd.f32 0.0, %v1558
        %v1560 = vpop.f32.mrf.mxu0
        %v1561 = vadd.f32 0.0, %v1560
        %1562 = vdwg.mxu0
        %v1563 = vpack.c.bf16 %v1561, %v1559
        %v1565 = vsel %vm1422, %v1563, 0
        %vm1567 = vcmask 1043456
        %v1569 = vsel %vm1567, %v1409, 0
        %1571 = vmatpush.bf16.msra.mxu0 0
        %1572 = vmatpush.bf16.msra.mxu0 0
        %1573 = vmatpush.bf16.msra.mxu0 0
        %1574 = vmatpush.bf16.msra.mxu0 0
        %1575 = vmatpush.bf16.msra.mxu0 0
        %1576 = vmatpush.bf16.msra.mxu0 0
        %1577 = vmatpush.bf16.msra.mxu0 0
        %1578 = vmatpush.bf16.msra.mxu0 %v1569
        %1579 = vmatmul.bf16.gmra.mxu0 %v1565
        %v1580 = vpop.f32.mrf.mxu0
        %v1581 = vadd.f32 0.0, %v1580
        %v1582 = vpop.f32.mrf.mxu0
        %v1583 = vadd.f32 0.0, %v1582
        %1584 = vdwg.mxu0
        %v1586 = vsel %vm1422, %v1491, 0
        %v1589 = vsel %vm1567, %v1408, 0
        %1591 = vmatpush.bf16.msra.mxu0 0
        %1592 = vmatpush.bf16.msra.mxu0 0
        %1593 = vmatpush.bf16.msra.mxu0 0
        %1594 = vmatpush.bf16.msra.mxu0 0
        %1595 = vmatpush.bf16.msra.mxu0 0
        %1596 = vmatpush.bf16.msra.mxu0 0
        %1597 = vmatpush.bf16.msra.mxu0 0
        %1598 = vmatpush.bf16.msra.mxu0 %v1589
        %1599 = vmatmul.bf16.gmra.mxu0 %v1586
        %v1600 = vpop.f32.mrf.mxu0
        %v1601 = vadd.f32 %v1581, %v1600
        %v1602 = vpop.f32.mrf.mxu0
        %v1603 = vadd.f32 %v1583, %v1602
        %1604 = vdwg.mxu0
        %1605 = vrot.lane.b32.xlu0 %v1419, 112
        %v1606 = vpop.permute.xlu0 %1605
        %1607 = vrot.lane.b32.xlu0 %v1419, 80
        %v1608 = vpop.permute.xlu0 %1607
        %v1610 = vsel %vm1422, %v1606, 0
        %v1613 = vsel %vm1422, %v1608, 0
        %1615 = vmatpush.bf16.xpose.msra.mxu0 0
        %1616 = vmatpush.bf16.xpose.msra.mxu0 0
        %1617 = vmatpush.bf16.xpose.msra.mxu0 0
        %1618 = vmatpush.bf16.xpose.msra.mxu0 0
        %1619 = vmatpush.bf16.xpose.msra.mxu0 0
        %1620 = vmatpush.bf16.xpose.msra.mxu0 0
        %1621 = vmatpush.bf16.xpose.msra.mxu0 0
        %1622 = vmatpush.bf16.xpose.msra.mxu0 %v1613
        %1623 = vmatmul.bf16.gmra.mxu0 %v1610
        %v1624 = vpop.f32.mrf.mxu0
        %v1625 = vadd.f32 0.0, %v1624
        %v1626 = vpop.f32.mrf.mxu0
        %v1627 = vadd.f32 0.0, %v1626
        %1628 = vdwg.mxu0
        %v1629 = vmul.f32 %v1625, 0.35355338
        %v1630 = vmul.f32 %v1627, 0.35355338
        %v1631 = vadd.f32 %v1629, %v1413
        %v1632 = vadd.f32 %v1630, %v1414
        %v1633 = vsel %vm1447, %v1631, -inf
        %1634 = vmax.xlane.f32.xlu0 %v1633
        %v1635 = vpop.xlane.xlu0 %1634
        %v1636 = vsel %vm1447, %v1632, -inf
        %1637 = vmax.xlane.f32.xlu0 %v1636
        %v1638 = vpop.xlane.xlu0 %1637
        %v1639 = vsub.f32 %v1631, %v1635
        %v1640 = vsub.f32 %v1632, %v1638
        %v1641 = vmul.f32 %v1639, 1.442695
        %v1642 = vpow.pop %v1641
        %v1643 = vmul.f32 %v1640, 1.442695
        %v1644 = vpow.pop %v1643
        %v1645 = vsel %vm1447, %v1642, 0.0
        %1646 = vadd.xlane.f32.xlu0 %v1645
        %v1647 = vpop.xlane.xlu0 %1646
        %v1648 = vsel %vm1447, %v1644, 0.0
        %1649 = vadd.xlane.f32.xlu0 %v1648
        %v1650 = vpop.xlane.xlu0 %1649
        %v1651 = vrcp.pop %v1647
        %v1652 = vrcp.pop %v1650
        %v1653 = vmul.f32 %v1642, %v1651
        %v1654 = vmul.f32 %v1644, %v1652
        %v1655 = vpack.c.bf16 %v1654, %v1653
        %1656 = vrot.lane.b32.xlu0 %v1419, 48
        %v1657 = vpop.permute.xlu0 %1656
        %v1660 = vsel %vm1447, %v1655, 0
        %1662 = vmatpush.bf16.msra.mxu0 0
        %1663 = vmatpush.bf16.msra.mxu0 0
        %1664 = vmatpush.bf16.msra.mxu0 0
        %1665 = vmatpush.bf16.msra.mxu0 0
        %1666 = vmatpush.bf16.msra.mxu0 0
        %1667 = vmatpush.bf16.msra.mxu0 0
        %1668 = vmatpush.bf16.msra.mxu0 0
        %1669 = vmatpush.bf16.msra.mxu0 %v1657
        %1670 = vmatmul.bf16.gmra.mxu0 %v1660
        %v1671 = vpop.f32.mrf.mxu0
        %v1672 = vadd.f32 0.0, %v1671
        %v1673 = vpop.f32.mrf.mxu0
        %v1674 = vadd.f32 0.0, %v1673
        %1675 = vdwg.mxu0
        %v1676 = vpack.c.bf16 %v1674, %v1672
        %v1678 = vsel %vm1422, %v1676, 0
        %v1681 = vsel %vm1567, %v1410, 0
        %1683 = vmatpush.bf16.msra.mxu0 0
        %1684 = vmatpush.bf16.msra.mxu0 0
        %1685 = vmatpush.bf16.msra.mxu0 0
        %1686 = vmatpush.bf16.msra.mxu0 0
        %1687 = vmatpush.bf16.msra.mxu0 0
        %1688 = vmatpush.bf16.msra.mxu0 0
        %1689 = vmatpush.bf16.msra.mxu0 0
        %1690 = vmatpush.bf16.msra.mxu0 %v1681
        %1691 = vmatmul.bf16.gmra.mxu0 %v1678
        %v1692 = vpop.f32.mrf.mxu0
        %v1693 = vadd.f32 0.0, %v1692
        %v1694 = vpop.f32.mrf.mxu0
        %v1695 = vadd.f32 0.0, %v1694
        %1696 = vdwg.mxu0
        %v1697 = vadd.f32 %v1601, %v1693
        %v1698 = vadd.f32 %v1603, %v1695
        %1699 = vrot.lane.b32.xlu0 %v1419, 104
        %v1700 = vpop.permute.xlu0 %1699
        %1701 = vrot.lane.b32.xlu0 %v1419, 72
        %v1702 = vpop.permute.xlu0 %1701
        %v1704 = vsel %vm1422, %v1700, 0
        %v1707 = vsel %vm1422, %v1702, 0
        %1709 = vmatpush.bf16.xpose.msra.mxu0 0
        %1710 = vmatpush.bf16.xpose.msra.mxu0 0
        %1711 = vmatpush.bf16.xpose.msra.mxu0 0
        %1712 = vmatpush.bf16.xpose.msra.mxu0 0
        %1713 = vmatpush.bf16.xpose.msra.mxu0 0
        %1714 = vmatpush.bf16.xpose.msra.mxu0 0
        %1715 = vmatpush.bf16.xpose.msra.mxu0 0
        %1716 = vmatpush.bf16.xpose.msra.mxu0 %v1707
        %1717 = vmatmul.bf16.gmra.mxu0 %v1704
        %v1718 = vpop.f32.mrf.mxu0
        %v1719 = vadd.f32 0.0, %v1718
        %v1720 = vpop.f32.mrf.mxu0
        %v1721 = vadd.f32 0.0, %v1720
        %1722 = vdwg.mxu0
        %v1723 = vmul.f32 %v1719, 0.35355338
        %v1724 = vmul.f32 %v1721, 0.35355338
        %v1725 = vadd.f32 %v1723, %v1413
        %v1726 = vadd.f32 %v1724, %v1414
        %v1727 = vsel %vm1447, %v1725, -inf
        %1728 = vmax.xlane.f32.xlu0 %v1727
        %v1729 = vpop.xlane.xlu0 %1728
        %v1730 = vsel %vm1447, %v1726, -inf
        %1731 = vmax.xlane.f32.xlu0 %v1730
        %v1732 = vpop.xlane.xlu0 %1731
        %v1733 = vsub.f32 %v1725, %v1729
        %v1734 = vsub.f32 %v1726, %v1732
        %v1735 = vmul.f32 %v1733, 1.442695
        %v1736 = vpow.pop %v1735
        %v1737 = vmul.f32 %v1734, 1.442695
        %v1738 = vpow.pop %v1737
        %v1739 = vsel %vm1447, %v1736, 0.0
        %1740 = vadd.xlane.f32.xlu0 %v1739
        %v1741 = vpop.xlane.xlu0 %1740
        %v1742 = vsel %vm1447, %v1738, 0.0
        %1743 = vadd.xlane.f32.xlu0 %v1742
        %v1744 = vpop.xlane.xlu0 %1743
        %v1745 = vrcp.pop %v1741
        %v1746 = vrcp.pop %v1744
        %v1747 = vmul.f32 %v1736, %v1745
        %v1748 = vmul.f32 %v1738, %v1746
        %v1749 = vpack.c.bf16 %v1748, %v1747
        %1750 = vrot.lane.b32.xlu0 %v1419, 40
        %v1751 = vpop.permute.xlu0 %1750
        %v1754 = vsel %vm1447, %v1749, 0
        %1756 = vmatpush.bf16.msra.mxu0 0
        %1757 = vmatpush.bf16.msra.mxu0 0
        %1758 = vmatpush.bf16.msra.mxu0 0
        %1759 = vmatpush.bf16.msra.mxu0 0
        %1760 = vmatpush.bf16.msra.mxu0 0
        %1761 = vmatpush.bf16.msra.mxu0 0
        %1762 = vmatpush.bf16.msra.mxu0 0
        %1763 = vmatpush.bf16.msra.mxu0 %v1751
        %1764 = vmatmul.bf16.gmra.mxu0 %v1754
        %v1765 = vpop.f32.mrf.mxu0
        %v1766 = vadd.f32 0.0, %v1765
        %v1767 = vpop.f32.mrf.mxu0
        %v1768 = vadd.f32 0.0, %v1767
        %1769 = vdwg.mxu0
        %v1770 = vpack.c.bf16 %v1768, %v1766
        %v1772 = vsel %vm1422, %v1770, 0
        %v1775 = vsel %vm1567, %v1411, 0
        %1777 = vmatpush.bf16.msra.mxu0 0
        %1778 = vmatpush.bf16.msra.mxu0 0
        %1779 = vmatpush.bf16.msra.mxu0 0
        %1780 = vmatpush.bf16.msra.mxu0 0
        %1781 = vmatpush.bf16.msra.mxu0 0
        %1782 = vmatpush.bf16.msra.mxu0 0
        %1783 = vmatpush.bf16.msra.mxu0 0
        %1784 = vmatpush.bf16.msra.mxu0 %v1775
        %1785 = vmatmul.bf16.gmra.mxu0 %v1772
        %v1786 = vpop.f32.mrf.mxu0
        %v1787 = vadd.f32 0.0, %v1786
        %v1788 = vpop.f32.mrf.mxu0
        %v1789 = vadd.f32 0.0, %v1788
        %1790 = vdwg.mxu0
        %v1791 = vadd.f32 %v1697, %v1787
        %v1792 = vadd.f32 %v1698, %v1789
        %v1793 = vadd.f32 %v1302, %v1791
        %v1794 = vadd.f32 %v1303, %v1792
        %v1796 = vperm.slane %v1412, 0
        %v1798 = vadd.f32 %v1793, %v1796
        %v1799 = vadd.f32 %v1794, %v1796
        %1800 = vst.msk [vmem:[#allocation2] sm:$0xff] %vm1306, %v1798
        %1801 = vst.msk [vmem:[#allocation2 + $0x8] sm:$0xff] %vm1306, %v1799
        %v1802 = vld [vmem:[#allocation2] sm:$0xff]
        %v1803 = vld [vmem:[#allocation2 + $0x8] sm:$0xff]
        %v1804 = vld [vmem:[%s768] sm:$0x1]
        %v1805 = vld [vmem:[%s771] sm:$0x1]
        %v1806 = vsel %vm1306, %v1802, 0.0
        %1807 = vadd.xlane.f32.xlu0 %v1806
        %v1808 = vpop.xlane.xlu0 %1807
        %v1809 = vsel %vm1306, %v1803, 0.0
        %1810 = vadd.xlane.f32.xlu0 %v1809
        %v1811 = vpop.xlane.xlu0 %1810
        %v1812 = vmul.f32 %v1808, %v1319
        %v1813 = vmul.f32 %v1811, %v1319
        %v1814 = vsub.f32 %v1802, %v1812
        %v1815 = vsub.f32 %v1803, %v1813
        %v1816 = vmul.f32 %v1814, %v1814
        %v1817 = vmul.f32 %v1815, %v1815
        %v1818 = vsel %vm1306, %v1816, 0.0
        %1819 = vadd.xlane.f32.xlu0 %v1818
        %v1820 = vpop.xlane.xlu0 %1819
        %v1821 = vsel %vm1306, %v1817, 0.0
        %1822 = vadd.xlane.f32.xlu0 %v1821
        %v1823 = vpop.xlane.xlu0 %1822
        %v1824 = vmul.f32 %v1820, %v1319
        %v1825 = vmul.f32 %v1823, %v1319
        %v1826 = vadd.f32 %v1824, 1e-06
        %v1827 = vadd.f32 %v1825, 1e-06
        %v1828 = vrsqrt.pop %v1826
        %v1829 = vmul.f32 %v1828, %v1826
        %v1830 = vmul.f32 %v1829, %v1828
        %v1831 = vmul.f32 0.5, %v1830
        %v1832 = vsub.f32 1.5, %v1831
        %v1833 = vmul.f32 %v1828, %v1832
        %vm1834 = vweird.f32 %v1826
        %vm1835 = vweird.f32 %v1828
        %vm1836 = vmor %vm1834, %vm1835
        %v1837 = vsel %vm1836, %v1828, %v1833
        %v1838 = vrsqrt.pop %v1827
        %v1839 = vmul.f32 %v1838, %v1827
        %v1840 = vmul.f32 %v1839, %v1838
        %v1841 = vmul.f32 0.5, %v1840
        %v1842 = vsub.f32 1.5, %v1841
        %v1843 = vmul.f32 %v1838, %v1842
        %vm1844 = vweird.f32 %v1827
        %vm1845 = vweird.f32 %v1838
        %vm1846 = vmor %vm1844, %vm1845
        %v1847 = vsel %vm1846, %v1838, %v1843
        %v1848 = vmul.f32 %v1814, %v1837
        %v1849 = vmul.f32 %v1815, %v1847
        %v1851 = vperm.slane %v1804, 0
        %v1853 = vmul.f32 %v1848, %v1851
        %v1854 = vmul.f32 %v1849, %v1851
        %v1856 = vperm.slane %v1805, 0
        %v1858 = vadd.f32 %v1853, %v1856
        %v1859 = vadd.f32 %v1854, %v1856
        %v1860 = vpack.c.bf16 %v1859, %v1858
        %v1861 = vld [vmem:[%s776] sm:$0xf]
        %v1862 = vld [vmem:[%s776 + $0x4] sm:$0xf]
        %v1863 = vld [vmem:[%s776 + $0x8] sm:$0xf]
        %v1864 = vld [vmem:[%s776 + $0xc] sm:$0xf]
        %v1865 = vld [vmem:[%s779] sm:$0x1]
        %v1867 = vperm.slane %v1865, 0
        %v1873 = vunpack.c.l.b16 %v1861
        %v1874 = vunpack.c.l.b16 %v1862
        %v1875 = vunpack.c.l.b16 %v1863
        %v1876 = vunpack.c.l.b16 %v1864
        %v1877 = vpack.c.b16 %v1874, %v1873
        %v1878 = vpack.c.b16 %v1876, %v1875
        %v1882 = vsel %vm1306, %v1860, 0
        %1884 = vmatpush.bf16.msra.mxu0 0
        %1885 = vmatpush.bf16.msra.mxu0 0
        %1886 = vmatpush.bf16.msra.mxu0 0
        %1887 = vmatpush.bf16.msra.mxu0 0
        %1888 = vmatpush.bf16.msra.mxu0 0
        %1889 = vmatpush.bf16.msra.mxu0 0
        %1890 = vmatpush.bf16.msra.mxu0 %v1878
        %1891 = vmatpush.bf16.msra.mxu0 %v1877
        %1892 = vmatmul.bf16.gmra.mxu0 %v1882
        %v1893 = vpop.f32.mrf.mxu0
        %v1894 = vadd.f32 %v1867, %v1893
        %v1895 = vpop.f32.mrf.mxu0
        %v1896 = vadd.f32 %v1867, %v1895
        %1897 = vdwg.mxu0
        %v1898 = vmul.f32 %v1894, 0.5
        %v1899 = vmul.f32 %v1896, 0.5
        %v1900 = vmul.f32 %v1894, 0.70710677
        %v1901 = vmul.f32 %v1896, 0.70710677
        %v1902 = vmul.f32 %v1900, %v1900
        %v1903 = vmin.f32 16.0, %v1902
        %v1904 = vmul.f32 %v1903, 2.1237322e-06
        %v1905 = vadd.f32 %v1904, 0.00028619796
        %v1906 = vmul.f32 %v1903, %v1905
        %v1907 = vadd.f32 %v1906, 0.0036580483
        %v1908 = vmul.f32 %v1903, %v1907
        %v1909 = vadd.f32 %v1908, 0.05243302
        %v1910 = vmul.f32 %v1903, %v1909
        %v1911 = vadd.f32 %v1910, 0.18741608
        %v1912 = vmul.f32 %v1903, %v1911
        %v1913 = vadd.f32 %v1912, 1.1283791
        %v1914 = vmul.f32 %v1900, %v1913
        %v1915 = vmul.f32 %v1903, 3.8918573e-05
        %v1916 = vadd.f32 %v1915, 0.001143296
        %v1917 = vmul.f32 %v1903, %v1916
        %v1918 = vadd.f32 %v1917, 0.014752088
        %v1919 = vmul.f32 %v1903, %v1918
        %v1920 = vadd.f32 %v1919, 0.112945676
        %v1921 = vmul.f32 %v1903, %v1920
        %v1922 = vadd.f32 %v1921, 0.4994258
        %v1923 = vmul.f32 %v1903, %v1922
        %v1924 = vadd.f32 %v1923, 1.0
        %v1925 = vrcp.pop %v1924
        %v1926 = vmul.f32 %v1924, %v1925
        %v1927 = vsub.f32 1.0, %v1926
        %v1928 = vmul.f32 %v1925, %v1927
        %v1929 = vadd.f32 %v1925, %v1928
        %vm1930 = vweird.f32 %v1924
        %vm1931 = vweird.f32 %v1925
        %vm1932 = vmor %vm1930, %vm1931
        %v1933 = vsel %vm1932, %v1925, %v1929
        %v1934 = vand.u32 2147483647, %v1924
        %vm1935 = vcmp.eq.f32.partialorder %v1934, 8.507059e+37
        %v1936 = vand.u32 %v1924, 2147483648
        %v1937 = vor.u32 1.1754944e-38, %v1936
        %v1938 = vsel %vm1935, %v1937, %v1933
        %v1939 = vmul.f32 %v1914, %v1938
        %v1940 = vmin.f32 %v1939, 1.0
        %v1941 = vmax.f32 %v1940, -1.0
        %v1942 = vmul.f32 %v1901, %v1901
        %v1943 = vmin.f32 16.0, %v1942
        %v1944 = vmul.f32 %v1943, 2.1237322e-06
        %v1945 = vadd.f32 %v1944, 0.00028619796
        %v1946 = vmul.f32 %v1943, %v1945
        %v1947 = vadd.f32 %v1946, 0.0036580483
        %v1948 = vmul.f32 %v1943, %v1947
        %v1949 = vadd.f32 %v1948, 0.05243302
        %v1950 = vmul.f32 %v1943, %v1949
        %v1951 = vadd.f32 %v1950, 0.18741608
        %v1952 = vmul.f32 %v1943, %v1951
        %v1953 = vadd.f32 %v1952, 1.1283791
        %v1954 = vmul.f32 %v1901, %v1953
        %v1955 = vmul.f32 %v1943, 3.8918573e-05
        %v1956 = vadd.f32 %v1955, 0.001143296
        %v1957 = vmul.f32 %v1943, %v1956
        %v1958 = vadd.f32 %v1957, 0.014752088
        %v1959 = vmul.f32 %v1943, %v1958
        %v1960 = vadd.f32 %v1959, 0.112945676
        %v1961 = vmul.f32 %v1943, %v1960
        %v1962 = vadd.f32 %v1961, 0.4994258
        %v1963 = vmul.f32 %v1943, %v1962
        %v1964 = vadd.f32 %v1963, 1.0
        %v1965 = vrcp.pop %v1964
        %v1966 = vmul.f32 %v1964, %v1965
        %v1967 = vsub.f32 1.0, %v1966
        %v1968 = vmul.f32 %v1965, %v1967
        %v1969 = vadd.f32 %v1965, %v1968
        %vm1970 = vweird.f32 %v1964
        %vm1971 = vweird.f32 %v1965
        %vm1972 = vmor %vm1970, %vm1971
        %v1973 = vsel %vm1972, %v1965, %v1969
        %v1974 = vand.u32 2147483647, %v1964
        %vm1975 = vcmp.eq.f32.partialorder %v1974, 8.507059e+37
        %v1976 = vand.u32 %v1964, 2147483648
        %v1977 = vor.u32 1.1754944e-38, %v1976
        %v1978 = vsel %vm1975, %v1977, %v1973
        %v1979 = vmul.f32 %v1954, %v1978
        %v1980 = vmin.f32 %v1979, 1.0
        %v1981 = vmax.f32 %v1980, -1.0
        %v1982 = vadd.f32 %v1941, 1.0
        %v1983 = vadd.f32 %v1981, 1.0
        %v1984 = vmul.f32 %v1898, %v1982
        %v1985 = vmul.f32 %v1899, %v1983
        %v1986 = vpack.c.bf16 %v1985, %v1984
        %v1987 = vld [vmem:[%s784] sm:$0xf]
        %v1988 = vld [vmem:[%s784 + $0x4] sm:$0xf]
        %v1989 = vld [vmem:[%s784 + $0x8] sm:$0xf]
        %v1990 = vld [vmem:[%s784 + $0xc] sm:$0xf]
        %v1991 = vld [vmem:[%s784 + $0x10] sm:$0xf]
        %v1992 = vld [vmem:[%s784 + $0x14] sm:$0xf]
        %v1993 = vld [vmem:[%s784 + $0x18] sm:$0xf]
        %v1994 = vld [vmem:[%s784 + $0x1c] sm:$0xf]
        %v1995 = vld [vmem:[%s784 + $0x20] sm:$0xf]
        %v1996 = vld [vmem:[%s784 + $0x24] sm:$0xf]
        %v1997 = vld [vmem:[%s784 + $0x28] sm:$0xf]
        %v1998 = vld [vmem:[%s784 + $0x2c] sm:$0xf]
        %v1999 = vld [vmem:[%s784 + $0x30] sm:$0xf]
        %v2000 = vld [vmem:[%s784 + $0x34] sm:$0xf]
        %v2001 = vld [vmem:[%s784 + $0x38] sm:$0xf]
        %v2002 = vld [vmem:[%s784 + $0x3c] sm:$0xf]
        %v2003 = vld [vmem:[%s787] sm:$0x1]
        %v2005 = vperm.slane %v2003, 0
        %v2023 = vunpack.c.l.b16 %v1987
        %v2024 = vunpack.c.l.b16 %v1988
        %v2025 = vunpack.c.l.b16 %v1989
        %v2026 = vunpack.c.l.b16 %v1990
        %v2027 = vunpack.c.l.b16 %v1991
        %v2028 = vunpack.c.l.b16 %v1992
        %v2029 = vunpack.c.l.b16 %v1993
        %v2030 = vunpack.c.l.b16 %v1994
        %v2031 = vunpack.c.l.b16 %v1995
        %v2032 = vunpack.c.l.b16 %v1996
        %v2033 = vunpack.c.l.b16 %v1997
        %v2034 = vunpack.c.l.b16 %v1998
        %v2035 = vunpack.c.l.b16 %v1999
        %v2036 = vunpack.c.l.b16 %v2000
        %v2037 = vunpack.c.l.b16 %v2001
        %v2038 = vunpack.c.l.b16 %v2002
        %v2039 = vpack.c.b16 %v2024, %v2023
        %v2040 = vpack.c.b16 %v2026, %v2025
        %v2041 = vpack.c.b16 %v2028, %v2027
        %v2042 = vpack.c.b16 %v2030, %v2029
        %v2043 = vpack.c.b16 %v2032, %v2031
        %v2044 = vpack.c.b16 %v2034, %v2033
        %v2045 = vpack.c.b16 %v2036, %v2035
        %v2046 = vpack.c.b16 %v2038, %v2037
        %2055 = vmatpush.bf16.msra.mxu0 %v2046
        %2056 = vmatpush.bf16.msra.mxu0 %v2045
        %2057 = vmatpush.bf16.msra.mxu0 %v2044
        %2058 = vmatpush.bf16.msra.mxu0 %v2043
        %2059 = vmatpush.bf16.msra.mxu0 %v2042
        %2060 = vmatpush.bf16.msra.mxu0 %v2041
        %2061 = vmatpush.bf16.msra.mxu0 %v2040
        %2062 = vmatpush.bf16.msra.mxu0 %v2039
        %2063 = vmatmul.bf16.gmra.mxu0 %v1986
        %v2064 = vpop.f32.mrf.mxu0
        %v2065 = vadd.f32 %v2005, %v2064
        %v2066 = vpop.f32.mrf.mxu0
        %v2067 = vadd.f32 %v2005, %v2066
        %2068 = vdwg.mxu0
        %v2069 = vadd.f32 %v1802, %v2065
        %v2070 = vadd.f32 %v1803, %v2067
        %2071 = vst.msk [vmem:[#allocation2] sm:$0xff] %vm1306, %v2069
        %2072 = vst.msk [vmem:[#allocation2 + $0x8] sm:$0xff] %vm1306, %v2070
        %p2073 = scmp.eq.s32.totalorder %s32, 1
        // Predicated region
        $region105: #{foundationmodel_forward.1} parent=99 // pred_check
          %p2074 = pneg %p2073
        $region106: #{foundationmodel_forward.1} parent=99 // pred_check_branch
          %2076 = sbr.rel (%p2074) target = $region108
        $region107: #{foundationmodel_forward.1} parent=99 // pred_region
          %v2077 = vld [vmem:[#allocation2] sm:$0xff]
          %v2078 = vld [vmem:[#allocation2 + $0x8] sm:$0xff]
          %v2080 = vrot.slane %v2078, 7
          %vm2082 = vcmask 1040384
          %v2083 = vsel %vm2082, %v2077, %v2080
          %v2084 = vld [vmem:[%s16] sm:$0x1]
          %v2085 = vld [vmem:[%s17] sm:$0x1]
          %vm2086 = vcmask 254976
          %v2087 = vsel %vm2086, %v2083, 0.0
          %2088 = vadd.xlane.f32.xlu0 %v2087
          %v2089 = vpop.xlane.xlu0 %2088
          %v2090 = vmul.f32 %v2089, %v1319
          %v2091 = vsub.f32 %v2083, %v2090
          %v2092 = vmul.f32 %v2091, %v2091
          %v2093 = vsel %vm2086, %v2092, 0.0
          %2094 = vadd.xlane.f32.xlu0 %v2093
          %v2095 = vpop.xlane.xlu0 %2094
          %v2096 = vmul.f32 %v2095, %v1319
          %v2097 = vadd.f32 %v2096, 1e-06
          %v2098 = vrsqrt.pop %v2097
          %v2099 = vmul.f32 %v2098, %v2097
          %v2100 = vmul.f32 %v2099, %v2098
          %v2101 = vmul.f32 0.5, %v2100
          %v2102 = vsub.f32 1.5, %v2101
          %v2103 = vmul.f32 %v2098, %v2102
          %vm2104 = vweird.f32 %v2097
          %vm2105 = vweird.f32 %v2098
          %vm2106 = vmor %vm2104, %vm2105
          %v2107 = vsel %vm2106, %v2098, %v2103
          %v2108 = vmul.f32 %v2091, %v2107
          %v2110 = vperm.slane %v2084, 0
          %v2112 = vmul.f32 %v2108, %v2110
          %v2114 = vperm.slane %v2085, 0
          %v2116 = vadd.f32 %v2112, %v2114
          %v2117 = vpack.c.bf16 %v2116, %v2116
          %v2118 = vld [vmem:[%s18] sm:$0xf]
          %v2119 = vld [vmem:[%s18 + $0x4] sm:$0xf]
          %v2120 = vld [vmem:[%s18 + $0x8] sm:$0xf]
          %v2121 = vld [vmem:[%s18 + $0xc] sm:$0xf]
          %v2122 = vld [vmem:[%s19] sm:$0x1]
          %v2124 = vperm.slane %v2122, 0
          %v2130 = vunpack.c.l.b16 %v2118
          %v2131 = vunpack.c.l.b16 %v2119
          %v2132 = vunpack.c.l.b16 %v2120
          %v2133 = vunpack.c.l.b16 %v2121
          %v2134 = vpack.c.b16 %v2131, %v2130
          %v2135 = vpack.c.b16 %v2133, %v2132
          %v2139 = vsel %vm1306, %v2117, 0
          %2141 = vmatpush.bf16.msra.mxu0 0
          %2142 = vmatpush.bf16.msra.mxu0 0
          %2143 = vmatpush.bf16.msra.mxu0 0
          %2144 = vmatpush.bf16.msra.mxu0 0
          %2145 = vmatpush.bf16.msra.mxu0 0
          %2146 = vmatpush.bf16.msra.mxu0 0
          %2147 = vmatpush.bf16.msra.mxu0 %v2135
          %2148 = vmatpush.bf16.msra.mxu0 %v2134
          %2149 = vmatmul.bf16.gmra.mxu0 %v2139
          %v2150 = vpop.f32.mrf.mxu0
          %v2151 = vadd.f32 %v2124, %v2150
          %v2152 = vpop.f32.mrf.mxu0
          %2153 = vdwg.mxu0
          %vm2154 = vcmask 74752
          %2155 = vst.msk [vmem:[#allocation3] sm:$0x3] %vm2154, %v2151
        $region108: #{foundationmodel_forward.1} parent=99 // pred_fallthru
          _
        // Predicated region
        $region109: #{foundationmodel_forward.1} parent=99 // pred_check
          %p2156 = pneg %p525
        $region110: #{foundationmodel_forward.1} parent=99 // pred_check_branch
          %2158 = sbr.rel (%p2156) target = $region112
        $region111: #{foundationmodel_forward.1} parent=99 // pred_region
          %2160 = vsyncadd [#allocation4], 0
          %s2162 = sshll.u32 [#allocation3], 4
          %s2163 = int_to_ptr.vmem [resolvable:$true] %s2162
          %s2164 = sshll.u32 %s20, 4
          %s2165 = int_to_ptr.hbm [resolvable:$true] %s2164
          %2167 = dma.vmem_to_hbm [thread:$0]  %s2163, 32, %s2165, [#allocation4]
        $region112: #{foundationmodel_forward.1} parent=99 // pred_fallthru
          _
        // Predicated region
        $region113: #{foundationmodel_forward.1} parent=99 // pred_check
          %p2168 = pneg %p525
        $region114: #{foundationmodel_forward.1} parent=99 // pred_check_branch
          %2170 = sbr.rel (%p2168) target = $region116
        $region115: #{foundationmodel_forward.1} parent=99 // pred_region
          %2172 = dma.done [#allocation4], 32
        $region116: #{foundationmodel_forward.1} parent=99 // pred_fallthru
          _
      $region100: #{foundationmodel_forward.1} parent=5 // pred_fallthru
        _
      %p2173 = scmp.le.s32.totalorder 2, %s27
      // Predicated region
      $region117: #{foundationmodel_forward.1} parent=5 // pred_check
        %p2174 = pneg %p2173
      $region118: #{foundationmodel_forward.1} parent=5 // pred_check_branch
        %2176 = sbr.rel (%p2174) target = $region120
      $region119: #{foundationmodel_forward.1} parent=5 // pred_region
        %s2177 = ssub.s32 %s27, 2
      $region120: #{foundationmodel_forward.1} parent=5 // pred_fallthru
        _
    $region6: #{foundationmodel_forward.1} parent=1 // loop_footer
      %s31 = sadd.s32 1, %s27
    $region7: #{foundationmodel_forward.1} parent=1 // loop_footer_branch
      %26 = sbr.rel target = $region3
    $region8: #{foundationmodel_forward.1} parent=1 // loop_exit
      _
    %2178 = vsyncpa [#allocation4], 1
    %s2179 = scalar_lea.sflag [#allocation4], 1
    %2180 = vsyncpa %s2179, 1

</llo_original>
